<compile_context>
chip_gen: v7x
topology: tpu7x:2x2x1
jax: 0.10.0
libtpu: 0.0.40
codegen_flags: <defaults>
</compile_context>

<pallas_src>
import jax
import jax.numpy as jnp
from jax.experimental import pallas as pl
from jax.experimental.pallas import tpu as pltpu


def lstm_kernel(x_ref,
                wih0_ref, whh0_ref, b0_ref,
                w1_ref, b1_ref,
                fc1w_ref, fc1b_ref,
                fc2w_ref, fc2b_ref,
                fc3w_ref, fc3b_ref,
                out_ref):
    T, BP, D = x_ref.shape
    H = whh0_ref.shape[0]          # whh0 is (H, 4H)
    G = 4 * H

    f32 = jnp.float32
    bf16 = jnp.bfloat16

    def cell(gates, c):
        """LSTM cell elementwise block.

        gates: (BP, 4H) f32 pre-activations in PyTorch gate order [i, f, g, o]; the
        g columns were pre-scaled by 2 in the wrapper so tanh(g) == 2*sigmoid(2g) - 1,
        leaving one full-vreg sigmoid + one (BP, H) tanh(c) of EUP work per step.
        """
        sig = jax.nn.sigmoid(gates)
        # NOTE: H=32 gate slices are 32-lane pieces of one vreg (lane offsets
        # 0/32/64/96).  TODO(synk): pad H to a multiple of 128 (or express the
        # alignment with pltpu.roll) at real model sizes so i/f/g/o are whole vregs.
        i = sig[:, 0 * H:1 * H]
        f = sig[:, 1 * H:2 * H]
        g = 2.0 * sig[:, 2 * H:3 * H] - 1.0          # tanh via pre-scaled sigmoid
        o = sig[:, 3 * H:4 * H]
        c_new = f * c + i * g
        h_new = o * jnp.tanh(c_new)
        return h_new, c_new

    # ------- Layer-0 input projection: hoisted, fully batched over time -------
    x2d = x_ref[...].reshape(T * BP, D)                              # free leading merge
    xg0 = (jnp.dot(x2d, wih0_ref[...], preferred_element_type=f32)
           + b0_ref[...]).reshape(T, BP, G)                          # bias folded once

    whh0 = whh0_ref[...]                                             # (H, 4H)  bf16
    w1 = w1_ref[...]                                                 # (2H, 4H) bf16
    b1 = b1_ref[...]                                                 # (1, 4H)  f32

    z = jnp.zeros((BP, H), f32)
    h0, c0, h1, c1 = z, z, z, z

    # ------- Wavefront over the two layers: super-step s = (L0 step s, L1 step s-1) --
    # TODO(synk): for long sequences switch to a partially-unrolled lax.fori_loop with
    # h/c carried in VMEM scratch and a T-chunked "arbitrary" grid axis.
    for s in range(T + 1):
        h0_in, h1_in, c1_in = h0, h1, c1             # layer-1 consumes pre-update state
        if s < T:                                     # layer-0, time step s
            gates0 = xg0[s] + jnp.dot(h0.astype(bf16), whh0,
                                      preferred_element_type=f32)
            h0, c0 = cell(gates0, c0)
        if s >= 1:                                    # layer-1, time step s-1
            lhs1 = jnp.concatenate([h0_in.astype(bf16), h1_in.astype(bf16)], axis=1)
            gates1 = jnp.dot(lhs1, w1, preferred_element_type=f32) + b1
            h1, c1 = cell(gates1, c1_in)

    # ------- FC head on the last timestep's top-layer h (dropouts are identity) ------
    y = jnp.dot(h1.astype(bf16), fc1w_ref[...], preferred_element_type=f32) + fc1b_ref[...]
    y = jnp.maximum(y, 0.0)
    y = jnp.dot(y.astype(bf16), fc2w_ref[...], preferred_element_type=f32) + fc2b_ref[...]
    y = jnp.maximum(y, 0.0)
    y = jnp.dot(y.astype(bf16), fc3w_ref[...], preferred_element_type=f32) + fc3b_ref[...]
    y = jax.nn.sigmoid(y)
    # TODO(synk): (BP, 1) output is a 1-lane masked store; widen to a lane-dense slab
    # if the head ever produces more than one value or BP grows.
    out_ref[...] = y.astype(out_ref.dtype)


def init_params(key, input_size, hidden_size):
    """PyTorch-style init: LSTM params ~ U(-1/sqrt(H), 1/sqrt(H)), Linear ~ U(-1/sqrt(fan_in), ...)."""
    H = hidden_size
    keys = jax.random.split(key, 14)

    def u(k, shape, fan_in):
        bound = float(fan_in) ** -0.5
        return jax.random.uniform(k, shape, jnp.float32, -bound, bound)

    return {
        # nn.LSTM layer 0
        "w_ih0": u(keys[0], (4 * H, input_size), H),
        "w_hh0": u(keys[1], (4 * H, H), H),
        "b_ih0": u(keys[2], (4 * H,), H),
        "b_hh0": u(keys[3], (4 * H,), H),
        # nn.LSTM layer 1
        "w_ih1": u(keys[4], (4 * H, H), H),
        "w_hh1": u(keys[5], (4 * H, H), H),
        "b_ih1": u(keys[6], (4 * H,), H),
        "b_hh1": u(keys[7], (4 * H,), H),
        # fc head: Linear(H,H), Linear(H,H//2), Linear(H//2,1)
        "fc1_w": u(keys[8], (H, H), H),
        "fc1_b": u(keys[9], (H,), H),
        "fc2_w": u(keys[10], (H // 2, H), H),
        "fc2_b": u(keys[11], (H // 2,), H),
        "fc3_w": u(keys[12], (1, H // 2), H // 2),
        "fc3_b": u(keys[13], (1,), H // 2),
    }


def prepare_params(params):
    """One-time weight preprocessing (hoisted out of the per-call path).

    Transposes to (in, out), folds LSTM biases, stacks layer-1 [W_ih1; W_hh1],
    pre-scales the g-gate columns by 2 (tanh(x) = 2*sigmoid(2x) - 1), and casts the
    MXU operands to bf16 (scale-by-2 is exact in bf16).  Biases stay f32.
    """
    H = params["w_hh0"].shape[1]
    f32, bf16 = jnp.float32, jnp.bfloat16

    def gscale(m):  # m: (..., 4H), PyTorch gate order [i, f, g, o] along last axis
        return m.at[..., 2 * H:3 * H].multiply(2.0)

    wih0 = gscale(params["w_ih0"].T.astype(f32)).astype(bf16)                   # (D, 4H)
    whh0 = gscale(params["w_hh0"].T.astype(f32)).astype(bf16)                   # (H, 4H)
    b0 = gscale((params["b_ih0"] + params["b_hh0"]).reshape(1, 4 * H).astype(f32))
    w1 = gscale(jnp.concatenate([params["w_ih1"].T, params["w_hh1"].T],
                                axis=0).astype(f32)).astype(bf16)               # (2H, 4H)
    b1 = gscale((params["b_ih1"] + params["b_hh1"]).reshape(1, 4 * H).astype(f32))

    fc1w = params["fc1_w"].T.astype(bf16)                                       # (H, H)
    fc1b = params["fc1_b"].reshape(1, -1).astype(f32)
    fc2w = params["fc2_w"].T.astype(bf16)                                       # (H, H//2)
    fc2b = params["fc2_b"].reshape(1, -1).astype(f32)
    fc3w = params["fc3_w"].T.astype(bf16)                                       # (H//2, 1)
    fc3b = params["fc3_b"].reshape(1, -1).astype(f32)

    return (wih0, whh0, b0, w1, b1, fc1w, fc1b, fc2w, fc2b, fc3w, fc3b)


def _round_up(n, m):
    return ((n + m - 1) // m) * m


@jax.jit
def lstm_forward(x, prepared):
    """x: (B, T, D) float32 (batch_first, like the PyTorch module). Returns (B, 1) f32."""
    B, T, D = x.shape
    wih0, whh0, b0, w1, b1, fc1w, fc1b, fc2w, fc2b, fc3w, fc3b = prepared

    # Pad batch to a sublane multiple (8) and present time-major bf16 to the kernel.
    # TODO(synk): pack more sequences per call (BP up to 64-128) to amortize the
    # serial recurrence over more MXU sublanes; here the workload batch is fixed at 2.
    BP = max(8, _round_up(B, 8))
    x_tbd = jnp.zeros((T, BP, D), jnp.bfloat16).at[:, :B, :].set(
        jnp.swapaxes(x, 0, 1).astype(jnp.bfloat16))

    args = (x_tbd, wih0, whh0, b0, w1, b1,
            fc1w, fc1b, fc2w, fc2b, fc3w, fc3b)

    vmem = pl.BlockSpec(memory_space=pltpu.MemorySpace.VMEM)

    # Explicit VMEM budget: inputs + intermediates + headroom (tiny at these shapes,
    # well under scoped/physical VMEM on v5e/v6e/v7x).
    in_bytes = sum(int(a.size) * a.dtype.itemsize for a in args)
    vmem_limit = int(min(32 * 1024 * 1024, max(8 * 1024 * 1024, 16 * in_bytes)))

    out = pl.pallas_call(
        lstm_kernel,
        out_shape=jax.ShapeDtypeStruct((BP, 1), jnp.float32),
        in_specs=[vmem] * len(args),
        out_specs=vmem,
        compiler_params=pltpu.CompilerParams(vmem_limit_bytes=vmem_limit),
    )(*args)
    return out[:B]


def lstm_reference(x, params):
    """Pure-JAX f32 reference matching PyTorch eval-mode forward (for validation)."""
    B, T, D = x.shape
    H = params["w_hh0"].shape[1]

    def layer(xs, w_ih, w_hh, b_ih, b_hh):
        h = jnp.zeros((B, H), jnp.float32)
        c = jnp.zeros((B, H), jnp.float32)
        hs = []
        for t in range(T):
            gates = xs[:, t, :] @ w_ih.T + h @ w_hh.T + b_ih + b_hh
            i = jax.nn.sigmoid(gates[:, 0 * H:1 * H])
            f = jax.nn.sigmoid(gates[:, 1 * H:2 * H])
            g = jnp.tanh(gates[:, 2 * H:3 * H])
            o = jax.nn.sigmoid(gates[:, 3 * H:4 * H])
            c = f * c + i * g
            h = o * jnp.tanh(c)
            hs.append(h)
        return jnp.stack(hs, axis=1)

    h0 = layer(x, params["w_ih0"], params["w_hh0"], params["b_ih0"], params["b_hh0"])
    h1 = layer(h0, params["w_ih1"], params["w_hh1"], params["b_ih1"], params["b_hh1"])
    last = h1[:, -1, :]
    y = jnp.maximum(last @ params["fc1_w"].T + params["fc1_b"], 0.0)
    y = jnp.maximum(y @ params["fc2_w"].T + params["fc2_b"], 0.0)
    return jax.nn.sigmoid(y @ params["fc3_w"].T + params["fc3_b"])


if __name__ == "__main__":
    key = jax.random.PRNGKey(0)
    k_param, k_x = jax.random.split(key)

    batch, seq, input_size, hidden_size = 2, 8, 16, 32

    params = init_params(k_param, input_size, hidden_size)
    prepared = prepare_params(params)          # one-time weight prep (off the hot path)
    x = jax.random.normal(k_x, (batch, seq, input_size), dtype=jnp.float32)

    out = lstm_forward(x, prepared)
    out = jax.block_until_ready(out)
    assert out.shape == (batch, 1), out.shape
    assert bool(jnp.all(jnp.isfinite(out)))

    # Tolerance check vs f32 reference (bf16 MXU operands drift slightly over T steps).
    ref = lstm_reference(x, params)
    max_err = float(jnp.max(jnp.abs(out - ref)))
    assert max_err < 5e-2, f"max abs error {max_err} vs reference"

    print("KERNEL_OK")
</pallas_src>

<mosaic_0001>
module attributes {stable_mosaic.version = 11 : i64} {
  func.func @lstm_kernel(%arg0: memref<8x8x16xbf16, #tpu.memory_space<vmem>>, %arg1: memref<16x128xbf16, #tpu.memory_space<vmem>>, %arg2: memref<32x128xbf16, #tpu.memory_space<vmem>>, %arg3: memref<1x128xf32, #tpu.memory_space<vmem>>, %arg4: memref<64x128xbf16, #tpu.memory_space<vmem>>, %arg5: memref<1x128xf32, #tpu.memory_space<vmem>>, %arg6: memref<32x32xbf16, #tpu.memory_space<vmem>>, %arg7: memref<1x32xf32, #tpu.memory_space<vmem>>, %arg8: memref<32x16xbf16, #tpu.memory_space<vmem>>, %arg9: memref<1x16xf32, #tpu.memory_space<vmem>>, %arg10: memref<16x1xbf16, #tpu.memory_space<vmem>>, %arg11: memref<1x1xf32, #tpu.memory_space<vmem>>, %arg12: memref<8x1xf32, #tpu.memory_space<vmem>>) attributes {dimension_semantics = [], scalar_prefetch = 0 : i64, scratch_operands = 0 : i64, tpu.core_type = #tpu.core_type<tc>} {
    %c0 = arith.constant 0 : index
    %c0_0 = arith.constant 0 : index
    %c0_1 = arith.constant 0 : index
    %0 = vector.load %arg0[%c0, %c0_0, %c0_1] : memref<8x8x16xbf16, #tpu.memory_space<vmem>>, vector<8x8x16xbf16>
    %1 = vector.shape_cast %0 : vector<8x8x16xbf16> to vector<64x16xbf16>
    %c0_2 = arith.constant 0 : index
    %c0_3 = arith.constant 0 : index
    %2 = vector.load %arg1[%c0_2, %c0_3] : memref<16x128xbf16, #tpu.memory_space<vmem>>, vector<16x128xbf16>
    %cst = arith.constant dense<0.000000e+00> : vector<64x128xf32>
    %3 = tpu.matmul %1, %2, %cst {dimension_numbers = #tpu.dot_dimension_numbers<[1], [0], [0], [1], [0, 0, 1, 1], [], []>} : vector<64x16xbf16>, vector<16x128xbf16>, vector<64x128xf32> -> vector<64x128xf32>
    %c0_4 = arith.constant 0 : index
    %c0_5 = arith.constant 0 : index
    %4 = vector.load %arg3[%c0_4, %c0_5] : memref<1x128xf32, #tpu.memory_space<vmem>>, vector<1x128xf32>
    %5 = vector.broadcast %4 : vector<1x128xf32> to vector<64x128xf32>
    %6 = arith.addf %3, %5 : vector<64x128xf32>
    %7 = vector.shape_cast %6 : vector<64x128xf32> to vector<8x8x128xf32>
    %c0_6 = arith.constant 0 : index
    %c0_7 = arith.constant 0 : index
    %8 = vector.load %arg2[%c0_6, %c0_7] : memref<32x128xbf16, #tpu.memory_space<vmem>>, vector<32x128xbf16>
    %c0_8 = arith.constant 0 : index
    %c0_9 = arith.constant 0 : index
    %9 = vector.load %arg4[%c0_8, %c0_9] : memref<64x128xbf16, #tpu.memory_space<vmem>>, vector<64x128xbf16>
    %c0_10 = arith.constant 0 : index
    %c0_11 = arith.constant 0 : index
    %10 = vector.load %arg5[%c0_10, %c0_11] : memref<1x128xf32, #tpu.memory_space<vmem>>, vector<1x128xf32>
    %cst_12 = arith.constant 0.000000e+00 : f32
    %11 = vector.broadcast %cst_12 : f32 to vector<8x32xf32>
    %12 = vector.extract_strided_slice %7 {offsets = [0, 0, 0], sizes = [1, 8, 128], strides = [1, 1, 1]} : vector<8x8x128xf32> to vector<1x8x128xf32>
    %13 = vector.shape_cast %12 : vector<1x8x128xf32> to vector<8x128xf32>
    %14 = arith.truncf %11 : vector<8x32xf32> to vector<8x32xbf16>
    %cst_13 = arith.constant dense<0.000000e+00> : vector<8x128xf32>
    %15 = tpu.matmul %14, %8, %cst_13 {dimension_numbers = #tpu.dot_dimension_numbers<[1], [0], [0], [1], [0, 0, 1, 1], [], []>} : vector<8x32xbf16>, vector<32x128xbf16>, vector<8x128xf32> -> vector<8x128xf32>
    %16 = arith.addf %13, %15 : vector<8x128xf32>
    %17 = arith.negf %16 : vector<8x128xf32>
    %18 = math.exp %17 : vector<8x128xf32>
    %cst_14 = arith.constant 1.000000e+00 : f32
    %19 = vector.broadcast %cst_14 : f32 to vector<8x128xf32>
    %20 = arith.addf %19, %18 : vector<8x128xf32>
    %21 = arith.divf %19, %20 : vector<8x128xf32>
    %22 = vector.extract_strided_slice %21 {offsets = [0, 0], sizes = [8, 32], strides = [1, 1]} : vector<8x128xf32> to vector<8x32xf32>
    %23 = vector.extract_strided_slice %21 {offsets = [0, 32], sizes = [8, 32], strides = [1, 1]} : vector<8x128xf32> to vector<8x32xf32>
    %24 = vector.extract_strided_slice %21 {offsets = [0, 64], sizes = [8, 32], strides = [1, 1]} : vector<8x128xf32> to vector<8x32xf32>
    %cst_15 = arith.constant 2.000000e+00 : f32
    %25 = vector.broadcast %cst_15 : f32 to vector<8x32xf32>
    %26 = arith.mulf %25, %24 : vector<8x32xf32>
    %cst_16 = arith.constant 1.000000e+00 : f32
    %27 = vector.broadcast %cst_16 : f32 to vector<8x32xf32>
    %28 = arith.subf %26, %27 : vector<8x32xf32>
    %29 = vector.extract_strided_slice %21 {offsets = [0, 96], sizes = [8, 32], strides = [1, 1]} : vector<8x128xf32> to vector<8x32xf32>
    %30 = arith.mulf %23, %11 : vector<8x32xf32>
    %31 = arith.mulf %22, %28 : vector<8x32xf32>
    %32 = arith.addf %30, %31 : vector<8x32xf32>
    %33 = math.tanh %32 : vector<8x32xf32>
    %34 = arith.mulf %29, %33 : vector<8x32xf32>
    %35 = vector.extract_strided_slice %7 {offsets = [1, 0, 0], sizes = [1, 8, 128], strides = [1, 1, 1]} : vector<8x8x128xf32> to vector<1x8x128xf32>
    %36 = vector.shape_cast %35 : vector<1x8x128xf32> to vector<8x128xf32>
    %37 = arith.truncf %34 : vector<8x32xf32> to vector<8x32xbf16>
    %cst_17 = arith.constant dense<0.000000e+00> : vector<8x128xf32>
    %38 = tpu.matmul %37, %8, %cst_17 {dimension_numbers = #tpu.dot_dimension_numbers<[1], [0], [0], [1], [0, 0, 1, 1], [], []>} : vector<8x32xbf16>, vector<32x128xbf16>, vector<8x128xf32> -> vector<8x128xf32>
    %39 = arith.addf %36, %38 : vector<8x128xf32>
    %40 = arith.negf %39 : vector<8x128xf32>
    %41 = math.exp %40 : vector<8x128xf32>
    %cst_18 = arith.constant 1.000000e+00 : f32
    %42 = vector.broadcast %cst_18 : f32 to vector<8x128xf32>
    %43 = arith.addf %42, %41 : vector<8x128xf32>
    %44 = arith.divf %42, %43 : vector<8x128xf32>
    %45 = vector.extract_strided_slice %44 {offsets = [0, 0], sizes = [8, 32], strides = [1, 1]} : vector<8x128xf32> to vector<8x32xf32>
    %46 = vector.extract_strided_slice %44 {offsets = [0, 32], sizes = [8, 32], strides = [1, 1]} : vector<8x128xf32> to vector<8x32xf32>
    %47 = vector.extract_strided_slice %44 {offsets = [0, 64], sizes = [8, 32], strides = [1, 1]} : vector<8x128xf32> to vector<8x32xf32>
    %cst_19 = arith.constant 2.000000e+00 : f32
    %48 = vector.broadcast %cst_19 : f32 to vector<8x32xf32>
    %49 = arith.mulf %48, %47 : vector<8x32xf32>
    %cst_20 = arith.constant 1.000000e+00 : f32
    %50 = vector.broadcast %cst_20 : f32 to vector<8x32xf32>
    %51 = arith.subf %49, %50 : vector<8x32xf32>
    %52 = vector.extract_strided_slice %44 {offsets = [0, 96], sizes = [8, 32], strides = [1, 1]} : vector<8x128xf32> to vector<8x32xf32>
    %53 = arith.mulf %46, %32 : vector<8x32xf32>
    %54 = arith.mulf %45, %51 : vector<8x32xf32>
    %55 = arith.addf %53, %54 : vector<8x32xf32>
    %56 = math.tanh %55 : vector<8x32xf32>
    %57 = arith.mulf %52, %56 : vector<8x32xf32>
    %58 = arith.truncf %34 : vector<8x32xf32> to vector<8x32xbf16>
    %59 = arith.truncf %11 : vector<8x32xf32> to vector<8x32xbf16>
    %60 = tpu.concatenate %58, %59 in 1 : vector<8x32xbf16>, vector<8x32xbf16> -> vector<8x64xbf16>
    %cst_21 = arith.constant dense<0.000000e+00> : vector<8x128xf32>
    %61 = tpu.matmul %60, %9, %cst_21 {dimension_numbers = #tpu.dot_dimension_numbers<[1], [0], [0], [1], [0, 0, 1, 1], [], []>} : vector<8x64xbf16>, vector<64x128xbf16>, vector<8x128xf32> -> vector<8x128xf32>
    %62 = vector.broadcast %10 : vector<1x128xf32> to vector<8x128xf32>
    %63 = arith.addf %61, %62 : vector<8x128xf32>
    %64 = arith.negf %63 : vector<8x128xf32>
    %65 = math.exp %64 : vector<8x128xf32>
    %cst_22 = arith.constant 1.000000e+00 : f32
    %66 = vector.broadcast %cst_22 : f32 to vector<8x128xf32>
    %67 = arith.addf %66, %65 : vector<8x128xf32>
    %68 = arith.divf %66, %67 : vector<8x128xf32>
    %69 = vector.extract_strided_slice %68 {offsets = [0, 0], sizes = [8, 32], strides = [1, 1]} : vector<8x128xf32> to vector<8x32xf32>
    %70 = vector.extract_strided_slice %68 {offsets = [0, 32], sizes = [8, 32], strides = [1, 1]} : vector<8x128xf32> to vector<8x32xf32>
    %71 = vector.extract_strided_slice %68 {offsets = [0, 64], sizes = [8, 32], strides = [1, 1]} : vector<8x128xf32> to vector<8x32xf32>
    %cst_23 = arith.constant 2.000000e+00 : f32
    %72 = vector.broadcast %cst_23 : f32 to vector<8x32xf32>
    %73 = arith.mulf %72, %71 : vector<8x32xf32>
    %cst_24 = arith.constant 1.000000e+00 : f32
    %74 = vector.broadcast %cst_24 : f32 to vector<8x32xf32>
    %75 = arith.subf %73, %74 : vector<8x32xf32>
    %76 = vector.extract_strided_slice %68 {offsets = [0, 96], sizes = [8, 32], strides = [1, 1]} : vector<8x128xf32> to vector<8x32xf32>
    %77 = arith.mulf %70, %11 : vector<8x32xf32>
    %78 = arith.mulf %69, %75 : vector<8x32xf32>
    %79 = arith.addf %77, %78 : vector<8x32xf32>
    %80 = math.tanh %79 : vector<8x32xf32>
    %81 = arith.mulf %76, %80 : vector<8x32xf32>
    %82 = vector.extract_strided_slice %7 {offsets = [2, 0, 0], sizes = [1, 8, 128], strides = [1, 1, 1]} : vector<8x8x128xf32> to vector<1x8x128xf32>
    %83 = vector.shape_cast %82 : vector<1x8x128xf32> to vector<8x128xf32>
    %84 = arith.truncf %57 : vector<8x32xf32> to vector<8x32xbf16>
    %cst_25 = arith.constant dense<0.000000e+00> : vector<8x128xf32>
    %85 = tpu.matmul %84, %8, %cst_25 {dimension_numbers = #tpu.dot_dimension_numbers<[1], [0], [0], [1], [0, 0, 1, 1], [], []>} : vector<8x32xbf16>, vector<32x128xbf16>, vector<8x128xf32> -> vector<8x128xf32>
    %86 = arith.addf %83, %85 : vector<8x128xf32>
    %87 = arith.negf %86 : vector<8x128xf32>
    %88 = math.exp %87 : vector<8x128xf32>
    %cst_26 = arith.constant 1.000000e+00 : f32
    %89 = vector.broadcast %cst_26 : f32 to vector<8x128xf32>
    %90 = arith.addf %89, %88 : vector<8x128xf32>
    %91 = arith.divf %89, %90 : vector<8x128xf32>
    %92 = vector.extract_strided_slice %91 {offsets = [0, 0], sizes = [8, 32], strides = [1, 1]} : vector<8x128xf32> to vector<8x32xf32>
    %93 = vector.extract_strided_slice %91 {offsets = [0, 32], sizes = [8, 32], strides = [1, 1]} : vector<8x128xf32> to vector<8x32xf32>
    %94 = vector.extract_strided_slice %91 {offsets = [0, 64], sizes = [8, 32], strides = [1, 1]} : vector<8x128xf32> to vector<8x32xf32>
    %cst_27 = arith.constant 2.000000e+00 : f32
    %95 = vector.broadcast %cst_27 : f32 to vector<8x32xf32>
    %96 = arith.mulf %95, %94 : vector<8x32xf32>
    %cst_28 = arith.constant 1.000000e+00 : f32
    %97 = vector.broadcast %cst_28 : f32 to vector<8x32xf32>
    %98 = arith.subf %96, %97 : vector<8x32xf32>
    %99 = vector.extract_strided_slice %91 {offsets = [0, 96], sizes = [8, 32], strides = [1, 1]} : vector<8x128xf32> to vector<8x32xf32>
    %100 = arith.mulf %93, %55 : vector<8x32xf32>
    %101 = arith.mulf %92, %98 : vector<8x32xf32>
    %102 = arith.addf %100, %101 : vector<8x32xf32>
    %103 = math.tanh %102 : vector<8x32xf32>
    %104 = arith.mulf %99, %103 : vector<8x32xf32>
    %105 = arith.truncf %57 : vector<8x32xf32> to vector<8x32xbf16>
    %106 = arith.truncf %81 : vector<8x32xf32> to vector<8x32xbf16>
    %107 = tpu.concatenate %105, %106 in 1 : vector<8x32xbf16>, vector<8x32xbf16> -> vector<8x64xbf16>
    %cst_29 = arith.constant dense<0.000000e+00> : vector<8x128xf32>
    %108 = tpu.matmul %107, %9, %cst_29 {dimension_numbers = #tpu.dot_dimension_numbers<[1], [0], [0], [1], [0, 0, 1, 1], [], []>} : vector<8x64xbf16>, vector<64x128xbf16>, vector<8x128xf32> -> vector<8x128xf32>
    %109 = vector.broadcast %10 : vector<1x128xf32> to vector<8x128xf32>
    %110 = arith.addf %108, %109 : vector<8x128xf32>
    %111 = arith.negf %110 : vector<8x128xf32>
    %112 = math.exp %111 : vector<8x128xf32>
    %cst_30 = arith.constant 1.000000e+00 : f32
    %113 = vector.broadcast %cst_30 : f32 to vector<8x128xf32>
    %114 = arith.addf %113, %112 : vector<8x128xf32>
    %115 = arith.divf %113, %114 : vector<8x128xf32>
    %116 = vector.extract_strided_slice %115 {offsets = [0, 0], sizes = [8, 32], strides = [1, 1]} : vector<8x128xf32> to vector<8x32xf32>
    %117 = vector.extract_strided_slice %115 {offsets = [0, 32], sizes = [8, 32], strides = [1, 1]} : vector<8x128xf32> to vector<8x32xf32>
    %118 = vector.extract_strided_slice %115 {offsets = [0, 64], sizes = [8, 32], strides = [1, 1]} : vector<8x128xf32> to vector<8x32xf32>
    %cst_31 = arith.constant 2.000000e+00 : f32
    %119 = vector.broadcast %cst_31 : f32 to vector<8x32xf32>
    %120 = arith.mulf %119, %118 : vector<8x32xf32>
    %cst_32 = arith.constant 1.000000e+00 : f32
    %121 = vector.broadcast %cst_32 : f32 to vector<8x32xf32>
    %122 = arith.subf %120, %121 : vector<8x32xf32>
    %123 = vector.extract_strided_slice %115 {offsets = [0, 96], sizes = [8, 32], strides = [1, 1]} : vector<8x128xf32> to vector<8x32xf32>
    %124 = arith.mulf %117, %79 : vector<8x32xf32>
    %125 = arith.mulf %116, %122 : vector<8x32xf32>
    %126 = arith.addf %124, %125 : vector<8x32xf32>
    %127 = math.tanh %126 : vector<8x32xf32>
    %128 = arith.mulf %123, %127 : vector<8x32xf32>
    %129 = vector.extract_strided_slice %7 {offsets = [3, 0, 0], sizes = [1, 8, 128], strides = [1, 1, 1]} : vector<8x8x128xf32> to vector<1x8x128xf32>
    %130 = vector.shape_cast %129 : vector<1x8x128xf32> to vector<8x128xf32>
    %131 = arith.truncf %104 : vector<8x32xf32> to vector<8x32xbf16>
    %cst_33 = arith.constant dense<0.000000e+00> : vector<8x128xf32>
    %132 = tpu.matmul %131, %8, %cst_33 {dimension_numbers = #tpu.dot_dimension_numbers<[1], [0], [0], [1], [0, 0, 1, 1], [], []>} : vector<8x32xbf16>, vector<32x128xbf16>, vector<8x128xf32> -> vector<8x128xf32>
    %133 = arith.addf %130, %132 : vector<8x128xf32>
    %134 = arith.negf %133 : vector<8x128xf32>
    %135 = math.exp %134 : vector<8x128xf32>
    %cst_34 = arith.constant 1.000000e+00 : f32
    %136 = vector.broadcast %cst_34 : f32 to vector<8x128xf32>
    %137 = arith.addf %136, %135 : vector<8x128xf32>
    %138 = arith.divf %136, %137 : vector<8x128xf32>
    %139 = vector.extract_strided_slice %138 {offsets = [0, 0], sizes = [8, 32], strides = [1, 1]} : vector<8x128xf32> to vector<8x32xf32>
    %140 = vector.extract_strided_slice %138 {offsets = [0, 32], sizes = [8, 32], strides = [1, 1]} : vector<8x128xf32> to vector<8x32xf32>
    %141 = vector.extract_strided_slice %138 {offsets = [0, 64], sizes = [8, 32], strides = [1, 1]} : vector<8x128xf32> to vector<8x32xf32>
    %cst_35 = arith.constant 2.000000e+00 : f32
    %142 = vector.broadcast %cst_35 : f32 to vector<8x32xf32>
    %143 = arith.mulf %142, %141 : vector<8x32xf32>
    %cst_36 = arith.constant 1.000000e+00 : f32
    %144 = vector.broadcast %cst_36 : f32 to vector<8x32xf32>
    %145 = arith.subf %143, %144 : vector<8x32xf32>
    %146 = vector.extract_strided_slice %138 {offsets = [0, 96], sizes = [8, 32], strides = [1, 1]} : vector<8x128xf32> to vector<8x32xf32>
    %147 = arith.mulf %140, %102 : vector<8x32xf32>
    %148 = arith.mulf %139, %145 : vector<8x32xf32>
    %149 = arith.addf %147, %148 : vector<8x32xf32>
    %150 = math.tanh %149 : vector<8x32xf32>
    %151 = arith.mulf %146, %150 : vector<8x32xf32>
    %152 = arith.truncf %104 : vector<8x32xf32> to vector<8x32xbf16>
    %153 = arith.truncf %128 : vector<8x32xf32> to vector<8x32xbf16>
    %154 = tpu.concatenate %152, %153 in 1 : vector<8x32xbf16>, vector<8x32xbf16> -> vector<8x64xbf16>
    %cst_37 = arith.constant dense<0.000000e+00> : vector<8x128xf32>
    %155 = tpu.matmul %154, %9, %cst_37 {dimension_numbers = #tpu.dot_dimension_numbers<[1], [0], [0], [1], [0, 0, 1, 1], [], []>} : vector<8x64xbf16>, vector<64x128xbf16>, vector<8x128xf32> -> vector<8x128xf32>
    %156 = vector.broadcast %10 : vector<1x128xf32> to vector<8x128xf32>
    %157 = arith.addf %155, %156 : vector<8x128xf32>
    %158 = arith.negf %157 : vector<8x128xf32>
    %159 = math.exp %158 : vector<8x128xf32>
    %cst_38 = arith.constant 1.000000e+00 : f32
    %160 = vector.broadcast %cst_38 : f32 to vector<8x128xf32>
    %161 = arith.addf %160, %159 : vector<8x128xf32>
    %162 = arith.divf %160, %161 : vector<8x128xf32>
    %163 = vector.extract_strided_slice %162 {offsets = [0, 0], sizes = [8, 32], strides = [1, 1]} : vector<8x128xf32> to vector<8x32xf32>
    %164 = vector.extract_strided_slice %162 {offsets = [0, 32], sizes = [8, 32], strides = [1, 1]} : vector<8x128xf32> to vector<8x32xf32>
    %165 = vector.extract_strided_slice %162 {offsets = [0, 64], sizes = [8, 32], strides = [1, 1]} : vector<8x128xf32> to vector<8x32xf32>
    %cst_39 = arith.constant 2.000000e+00 : f32
    %166 = vector.broadcast %cst_39 : f32 to vector<8x32xf32>
    %167 = arith.mulf %166, %165 : vector<8x32xf32>
    %cst_40 = arith.constant 1.000000e+00 : f32
    %168 = vector.broadcast %cst_40 : f32 to vector<8x32xf32>
    %169 = arith.subf %167, %168 : vector<8x32xf32>
    %170 = vector.extract_strided_slice %162 {offsets = [0, 96], sizes = [8, 32], strides = [1, 1]} : vector<8x128xf32> to vector<8x32xf32>
    %171 = arith.mulf %164, %126 : vector<8x32xf32>
    %172 = arith.mulf %163, %169 : vector<8x32xf32>
    %173 = arith.addf %171, %172 : vector<8x32xf32>
    %174 = math.tanh %173 : vector<8x32xf32>
    %175 = arith.mulf %170, %174 : vector<8x32xf32>
    %176 = vector.extract_strided_slice %7 {offsets = [4, 0, 0], sizes = [1, 8, 128], strides = [1, 1, 1]} : vector<8x8x128xf32> to vector<1x8x128xf32>
    %177 = vector.shape_cast %176 : vector<1x8x128xf32> to vector<8x128xf32>
    %178 = arith.truncf %151 : vector<8x32xf32> to vector<8x32xbf16>
    %cst_41 = arith.constant dense<0.000000e+00> : vector<8x128xf32>
    %179 = tpu.matmul %178, %8, %cst_41 {dimension_numbers = #tpu.dot_dimension_numbers<[1], [0], [0], [1], [0, 0, 1, 1], [], []>} : vector<8x32xbf16>, vector<32x128xbf16>, vector<8x128xf32> -> vector<8x128xf32>
    %180 = arith.addf %177, %179 : vector<8x128xf32>
    %181 = arith.negf %180 : vector<8x128xf32>
    %182 = math.exp %181 : vector<8x128xf32>
    %cst_42 = arith.constant 1.000000e+00 : f32
    %183 = vector.broadcast %cst_42 : f32 to vector<8x128xf32>
    %184 = arith.addf %183, %182 : vector<8x128xf32>
    %185 = arith.divf %183, %184 : vector<8x128xf32>
    %186 = vector.extract_strided_slice %185 {offsets = [0, 0], sizes = [8, 32], strides = [1, 1]} : vector<8x128xf32> to vector<8x32xf32>
    %187 = vector.extract_strided_slice %185 {offsets = [0, 32], sizes = [8, 32], strides = [1, 1]} : vector<8x128xf32> to vector<8x32xf32>
    %188 = vector.extract_strided_slice %185 {offsets = [0, 64], sizes = [8, 32], strides = [1, 1]} : vector<8x128xf32> to vector<8x32xf32>
    %cst_43 = arith.constant 2.000000e+00 : f32
    %189 = vector.broadcast %cst_43 : f32 to vector<8x32xf32>
    %190 = arith.mulf %189, %188 : vector<8x32xf32>
    %cst_44 = arith.constant 1.000000e+00 : f32
    %191 = vector.broadcast %cst_44 : f32 to vector<8x32xf32>
    %192 = arith.subf %190, %191 : vector<8x32xf32>
    %193 = vector.extract_strided_slice %185 {offsets = [0, 96], sizes = [8, 32], strides = [1, 1]} : vector<8x128xf32> to vector<8x32xf32>
    %194 = arith.mulf %187, %149 : vector<8x32xf32>
    %195 = arith.mulf %186, %192 : vector<8x32xf32>
    %196 = arith.addf %194, %195 : vector<8x32xf32>
    %197 = math.tanh %196 : vector<8x32xf32>
    %198 = arith.mulf %193, %197 : vector<8x32xf32>
    %199 = arith.truncf %151 : vector<8x32xf32> to vector<8x32xbf16>
    %200 = arith.truncf %175 : vector<8x32xf32> to vector<8x32xbf16>
    %201 = tpu.concatenate %199, %200 in 1 : vector<8x32xbf16>, vector<8x32xbf16> -> vector<8x64xbf16>
    %cst_45 = arith.constant dense<0.000000e+00> : vector<8x128xf32>
    %202 = tpu.matmul %201, %9, %cst_45 {dimension_numbers = #tpu.dot_dimension_numbers<[1], [0], [0], [1], [0, 0, 1, 1], [], []>} : vector<8x64xbf16>, vector<64x128xbf16>, vector<8x128xf32> -> vector<8x128xf32>
    %203 = vector.broadcast %10 : vector<1x128xf32> to vector<8x128xf32>
    %204 = arith.addf %202, %203 : vector<8x128xf32>
    %205 = arith.negf %204 : vector<8x128xf32>
    %206 = math.exp %205 : vector<8x128xf32>
    %cst_46 = arith.constant 1.000000e+00 : f32
    %207 = vector.broadcast %cst_46 : f32 to vector<8x128xf32>
    %208 = arith.addf %207, %206 : vector<8x128xf32>
    %209 = arith.divf %207, %208 : vector<8x128xf32>
    %210 = vector.extract_strided_slice %209 {offsets = [0, 0], sizes = [8, 32], strides = [1, 1]} : vector<8x128xf32> to vector<8x32xf32>
    %211 = vector.extract_strided_slice %209 {offsets = [0, 32], sizes = [8, 32], strides = [1, 1]} : vector<8x128xf32> to vector<8x32xf32>
    %212 = vector.extract_strided_slice %209 {offsets = [0, 64], sizes = [8, 32], strides = [1, 1]} : vector<8x128xf32> to vector<8x32xf32>
    %cst_47 = arith.constant 2.000000e+00 : f32
    %213 = vector.broadcast %cst_47 : f32 to vector<8x32xf32>
    %214 = arith.mulf %213, %212 : vector<8x32xf32>
    %cst_48 = arith.constant 1.000000e+00 : f32
    %215 = vector.broadcast %cst_48 : f32 to vector<8x32xf32>
    %216 = arith.subf %214, %215 : vector<8x32xf32>
    %217 = vector.extract_strided_slice %209 {offsets = [0, 96], sizes = [8, 32], strides = [1, 1]} : vector<8x128xf32> to vector<8x32xf32>
    %218 = arith.mulf %211, %173 : vector<8x32xf32>
    %219 = arith.mulf %210, %216 : vector<8x32xf32>
    %220 = arith.addf %218, %219 : vector<8x32xf32>
    %221 = math.tanh %220 : vector<8x32xf32>
    %222 = arith.mulf %217, %221 : vector<8x32xf32>
    %223 = vector.extract_strided_slice %7 {offsets = [5, 0, 0], sizes = [1, 8, 128], strides = [1, 1, 1]} : vector<8x8x128xf32> to vector<1x8x128xf32>
    %224 = vector.shape_cast %223 : vector<1x8x128xf32> to vector<8x128xf32>
    %225 = arith.truncf %198 : vector<8x32xf32> to vector<8x32xbf16>
    %cst_49 = arith.constant dense<0.000000e+00> : vector<8x128xf32>
    %226 = tpu.matmul %225, %8, %cst_49 {dimension_numbers = #tpu.dot_dimension_numbers<[1], [0], [0], [1], [0, 0, 1, 1], [], []>} : vector<8x32xbf16>, vector<32x128xbf16>, vector<8x128xf32> -> vector<8x128xf32>
    %227 = arith.addf %224, %226 : vector<8x128xf32>
    %228 = arith.negf %227 : vector<8x128xf32>
    %229 = math.exp %228 : vector<8x128xf32>
    %cst_50 = arith.constant 1.000000e+00 : f32
    %230 = vector.broadcast %cst_50 : f32 to vector<8x128xf32>
    %231 = arith.addf %230, %229 : vector<8x128xf32>
    %232 = arith.divf %230, %231 : vector<8x128xf32>
    %233 = vector.extract_strided_slice %232 {offsets = [0, 0], sizes = [8, 32], strides = [1, 1]} : vector<8x128xf32> to vector<8x32xf32>
    %234 = vector.extract_strided_slice %232 {offsets = [0, 32], sizes = [8, 32], strides = [1, 1]} : vector<8x128xf32> to vector<8x32xf32>
    %235 = vector.extract_strided_slice %232 {offsets = [0, 64], sizes = [8, 32], strides = [1, 1]} : vector<8x128xf32> to vector<8x32xf32>
    %cst_51 = arith.constant 2.000000e+00 : f32
    %236 = vector.broadcast %cst_51 : f32 to vector<8x32xf32>
    %237 = arith.mulf %236, %235 : vector<8x32xf32>
    %cst_52 = arith.constant 1.000000e+00 : f32
    %238 = vector.broadcast %cst_52 : f32 to vector<8x32xf32>
    %239 = arith.subf %237, %238 : vector<8x32xf32>
    %240 = vector.extract_strided_slice %232 {offsets = [0, 96], sizes = [8, 32], strides = [1, 1]} : vector<8x128xf32> to vector<8x32xf32>
    %241 = arith.mulf %234, %196 : vector<8x32xf32>
    %242 = arith.mulf %233, %239 : vector<8x32xf32>
    %243 = arith.addf %241, %242 : vector<8x32xf32>
    %244 = math.tanh %243 : vector<8x32xf32>
    %245 = arith.mulf %240, %244 : vector<8x32xf32>
    %246 = arith.truncf %198 : vector<8x32xf32> to vector<8x32xbf16>
    %247 = arith.truncf %222 : vector<8x32xf32> to vector<8x32xbf16>
    %248 = tpu.concatenate %246, %247 in 1 : vector<8x32xbf16>, vector<8x32xbf16> -> vector<8x64xbf16>
    %cst_53 = arith.constant dense<0.000000e+00> : vector<8x128xf32>
    %249 = tpu.matmul %248, %9, %cst_53 {dimension_numbers = #tpu.dot_dimension_numbers<[1], [0], [0], [1], [0, 0, 1, 1], [], []>} : vector<8x64xbf16>, vector<64x128xbf16>, vector<8x128xf32> -> vector<8x128xf32>
    %250 = vector.broadcast %10 : vector<1x128xf32> to vector<8x128xf32>
    %251 = arith.addf %249, %250 : vector<8x128xf32>
    %252 = arith.negf %251 : vector<8x128xf32>
    %253 = math.exp %252 : vector<8x128xf32>
    %cst_54 = arith.constant 1.000000e+00 : f32
    %254 = vector.broadcast %cst_54 : f32 to vector<8x128xf32>
    %255 = arith.addf %254, %253 : vector<8x128xf32>
    %256 = arith.divf %254, %255 : vector<8x128xf32>
    %257 = vector.extract_strided_slice %256 {offsets = [0, 0], sizes = [8, 32], strides = [1, 1]} : vector<8x128xf32> to vector<8x32xf32>
    %258 = vector.extract_strided_slice %256 {offsets = [0, 32], sizes = [8, 32], strides = [1, 1]} : vector<8x128xf32> to vector<8x32xf32>
    %259 = vector.extract_strided_slice %256 {offsets = [0, 64], sizes = [8, 32], strides = [1, 1]} : vector<8x128xf32> to vector<8x32xf32>
    %cst_55 = arith.constant 2.000000e+00 : f32
    %260 = vector.broadcast %cst_55 : f32 to vector<8x32xf32>
    %261 = arith.mulf %260, %259 : vector<8x32xf32>
    %cst_56 = arith.constant 1.000000e+00 : f32
    %262 = vector.broadcast %cst_56 : f32 to vector<8x32xf32>
    %263 = arith.subf %261, %262 : vector<8x32xf32>
    %264 = vector.extract_strided_slice %256 {offsets = [0, 96], sizes = [8, 32], strides = [1, 1]} : vector<8x128xf32> to vector<8x32xf32>
    %265 = arith.mulf %258, %220 : vector<8x32xf32>
    %266 = arith.mulf %257, %263 : vector<8x32xf32>
    %267 = arith.addf %265, %266 : vector<8x32xf32>
    %268 = math.tanh %267 : vector<8x32xf32>
    %269 = arith.mulf %264, %268 : vector<8x32xf32>
    %270 = vector.extract_strided_slice %7 {offsets = [6, 0, 0], sizes = [1, 8, 128], strides = [1, 1, 1]} : vector<8x8x128xf32> to vector<1x8x128xf32>
    %271 = vector.shape_cast %270 : vector<1x8x128xf32> to vector<8x128xf32>
    %272 = arith.truncf %245 : vector<8x32xf32> to vector<8x32xbf16>
    %cst_57 = arith.constant dense<0.000000e+00> : vector<8x128xf32>
    %273 = tpu.matmul %272, %8, %cst_57 {dimension_numbers = #tpu.dot_dimension_numbers<[1], [0], [0], [1], [0, 0, 1, 1], [], []>} : vector<8x32xbf16>, vector<32x128xbf16>, vector<8x128xf32> -> vector<8x128xf32>
    %274 = arith.addf %271, %273 : vector<8x128xf32>
    %275 = arith.negf %274 : vector<8x128xf32>
    %276 = math.exp %275 : vector<8x128xf32>
    %cst_58 = arith.constant 1.000000e+00 : f32
    %277 = vector.broadcast %cst_58 : f32 to vector<8x128xf32>
    %278 = arith.addf %277, %276 : vector<8x128xf32>
    %279 = arith.divf %277, %278 : vector<8x128xf32>
    %280 = vector.extract_strided_slice %279 {offsets = [0, 0], sizes = [8, 32], strides = [1, 1]} : vector<8x128xf32> to vector<8x32xf32>
    %281 = vector.extract_strided_slice %279 {offsets = [0, 32], sizes = [8, 32], strides = [1, 1]} : vector<8x128xf32> to vector<8x32xf32>
    %282 = vector.extract_strided_slice %279 {offsets = [0, 64], sizes = [8, 32], strides = [1, 1]} : vector<8x128xf32> to vector<8x32xf32>
    %cst_59 = arith.constant 2.000000e+00 : f32
    %283 = vector.broadcast %cst_59 : f32 to vector<8x32xf32>
    %284 = arith.mulf %283, %282 : vector<8x32xf32>
    %cst_60 = arith.constant 1.000000e+00 : f32
    %285 = vector.broadcast %cst_60 : f32 to vector<8x32xf32>
    %286 = arith.subf %284, %285 : vector<8x32xf32>
    %287 = vector.extract_strided_slice %279 {offsets = [0, 96], sizes = [8, 32], strides = [1, 1]} : vector<8x128xf32> to vector<8x32xf32>
    %288 = arith.mulf %281, %243 : vector<8x32xf32>
    %289 = arith.mulf %280, %286 : vector<8x32xf32>
    %290 = arith.addf %288, %289 : vector<8x32xf32>
    %291 = math.tanh %290 : vector<8x32xf32>
    %292 = arith.mulf %287, %291 : vector<8x32xf32>
    %293 = arith.truncf %245 : vector<8x32xf32> to vector<8x32xbf16>
    %294 = arith.truncf %269 : vector<8x32xf32> to vector<8x32xbf16>
    %295 = tpu.concatenate %293, %294 in 1 : vector<8x32xbf16>, vector<8x32xbf16> -> vector<8x64xbf16>
    %cst_61 = arith.constant dense<0.000000e+00> : vector<8x128xf32>
    %296 = tpu.matmul %295, %9, %cst_61 {dimension_numbers = #tpu.dot_dimension_numbers<[1], [0], [0], [1], [0, 0, 1, 1], [], []>} : vector<8x64xbf16>, vector<64x128xbf16>, vector<8x128xf32> -> vector<8x128xf32>
    %297 = vector.broadcast %10 : vector<1x128xf32> to vector<8x128xf32>
    %298 = arith.addf %296, %297 : vector<8x128xf32>
    %299 = arith.negf %298 : vector<8x128xf32>
    %300 = math.exp %299 : vector<8x128xf32>
    %cst_62 = arith.constant 1.000000e+00 : f32
    %301 = vector.broadcast %cst_62 : f32 to vector<8x128xf32>
    %302 = arith.addf %301, %300 : vector<8x128xf32>
    %303 = arith.divf %301, %302 : vector<8x128xf32>
    %304 = vector.extract_strided_slice %303 {offsets = [0, 0], sizes = [8, 32], strides = [1, 1]} : vector<8x128xf32> to vector<8x32xf32>
    %305 = vector.extract_strided_slice %303 {offsets = [0, 32], sizes = [8, 32], strides = [1, 1]} : vector<8x128xf32> to vector<8x32xf32>
    %306 = vector.extract_strided_slice %303 {offsets = [0, 64], sizes = [8, 32], strides = [1, 1]} : vector<8x128xf32> to vector<8x32xf32>
    %cst_63 = arith.constant 2.000000e+00 : f32
    %307 = vector.broadcast %cst_63 : f32 to vector<8x32xf32>
    %308 = arith.mulf %307, %306 : vector<8x32xf32>
    %cst_64 = arith.constant 1.000000e+00 : f32
    %309 = vector.broadcast %cst_64 : f32 to vector<8x32xf32>
    %310 = arith.subf %308, %309 : vector<8x32xf32>
    %311 = vector.extract_strided_slice %303 {offsets = [0, 96], sizes = [8, 32], strides = [1, 1]} : vector<8x128xf32> to vector<8x32xf32>
    %312 = arith.mulf %305, %267 : vector<8x32xf32>
    %313 = arith.mulf %304, %310 : vector<8x32xf32>
    %314 = arith.addf %312, %313 : vector<8x32xf32>
    %315 = math.tanh %314 : vector<8x32xf32>
    %316 = arith.mulf %311, %315 : vector<8x32xf32>
    %317 = vector.extract_strided_slice %7 {offsets = [7, 0, 0], sizes = [1, 8, 128], strides = [1, 1, 1]} : vector<8x8x128xf32> to vector<1x8x128xf32>
    %318 = vector.shape_cast %317 : vector<1x8x128xf32> to vector<8x128xf32>
    %319 = arith.truncf %292 : vector<8x32xf32> to vector<8x32xbf16>
    %cst_65 = arith.constant dense<0.000000e+00> : vector<8x128xf32>
    %320 = tpu.matmul %319, %8, %cst_65 {dimension_numbers = #tpu.dot_dimension_numbers<[1], [0], [0], [1], [0, 0, 1, 1], [], []>} : vector<8x32xbf16>, vector<32x128xbf16>, vector<8x128xf32> -> vector<8x128xf32>
    %321 = arith.addf %318, %320 : vector<8x128xf32>
    %322 = arith.negf %321 : vector<8x128xf32>
    %323 = math.exp %322 : vector<8x128xf32>
    %cst_66 = arith.constant 1.000000e+00 : f32
    %324 = vector.broadcast %cst_66 : f32 to vector<8x128xf32>
    %325 = arith.addf %324, %323 : vector<8x128xf32>
    %326 = arith.divf %324, %325 : vector<8x128xf32>
    %327 = vector.extract_strided_slice %326 {offsets = [0, 0], sizes = [8, 32], strides = [1, 1]} : vector<8x128xf32> to vector<8x32xf32>
    %328 = vector.extract_strided_slice %326 {offsets = [0, 32], sizes = [8, 32], strides = [1, 1]} : vector<8x128xf32> to vector<8x32xf32>
    %329 = vector.extract_strided_slice %326 {offsets = [0, 64], sizes = [8, 32], strides = [1, 1]} : vector<8x128xf32> to vector<8x32xf32>
    %cst_67 = arith.constant 2.000000e+00 : f32
    %330 = vector.broadcast %cst_67 : f32 to vector<8x32xf32>
    %331 = arith.mulf %330, %329 : vector<8x32xf32>
    %cst_68 = arith.constant 1.000000e+00 : f32
    %332 = vector.broadcast %cst_68 : f32 to vector<8x32xf32>
    %333 = arith.subf %331, %332 : vector<8x32xf32>
    %334 = vector.extract_strided_slice %326 {offsets = [0, 96], sizes = [8, 32], strides = [1, 1]} : vector<8x128xf32> to vector<8x32xf32>
    %335 = arith.mulf %328, %290 : vector<8x32xf32>
    %336 = arith.mulf %327, %333 : vector<8x32xf32>
    %337 = arith.addf %335, %336 : vector<8x32xf32>
    %338 = math.tanh %337 : vector<8x32xf32>
    %339 = arith.mulf %334, %338 : vector<8x32xf32>
    %340 = arith.truncf %292 : vector<8x32xf32> to vector<8x32xbf16>
    %341 = arith.truncf %316 : vector<8x32xf32> to vector<8x32xbf16>
    %342 = tpu.concatenate %340, %341 in 1 : vector<8x32xbf16>, vector<8x32xbf16> -> vector<8x64xbf16>
    %cst_69 = arith.constant dense<0.000000e+00> : vector<8x128xf32>
    %343 = tpu.matmul %342, %9, %cst_69 {dimension_numbers = #tpu.dot_dimension_numbers<[1], [0], [0], [1], [0, 0, 1, 1], [], []>} : vector<8x64xbf16>, vector<64x128xbf16>, vector<8x128xf32> -> vector<8x128xf32>
    %344 = vector.broadcast %10 : vector<1x128xf32> to vector<8x128xf32>
    %345 = arith.addf %343, %344 : vector<8x128xf32>
    %346 = arith.negf %345 : vector<8x128xf32>
    %347 = math.exp %346 : vector<8x128xf32>
    %cst_70 = arith.constant 1.000000e+00 : f32
    %348 = vector.broadcast %cst_70 : f32 to vector<8x128xf32>
    %349 = arith.addf %348, %347 : vector<8x128xf32>
    %350 = arith.divf %348, %349 : vector<8x128xf32>
    %351 = vector.extract_strided_slice %350 {offsets = [0, 0], sizes = [8, 32], strides = [1, 1]} : vector<8x128xf32> to vector<8x32xf32>
    %352 = vector.extract_strided_slice %350 {offsets = [0, 32], sizes = [8, 32], strides = [1, 1]} : vector<8x128xf32> to vector<8x32xf32>
    %353 = vector.extract_strided_slice %350 {offsets = [0, 64], sizes = [8, 32], strides = [1, 1]} : vector<8x128xf32> to vector<8x32xf32>
    %cst_71 = arith.constant 2.000000e+00 : f32
    %354 = vector.broadcast %cst_71 : f32 to vector<8x32xf32>
    %355 = arith.mulf %354, %353 : vector<8x32xf32>
    %cst_72 = arith.constant 1.000000e+00 : f32
    %356 = vector.broadcast %cst_72 : f32 to vector<8x32xf32>
    %357 = arith.subf %355, %356 : vector<8x32xf32>
    %358 = vector.extract_strided_slice %350 {offsets = [0, 96], sizes = [8, 32], strides = [1, 1]} : vector<8x128xf32> to vector<8x32xf32>
    %359 = arith.mulf %352, %314 : vector<8x32xf32>
    %360 = arith.mulf %351, %357 : vector<8x32xf32>
    %361 = arith.addf %359, %360 : vector<8x32xf32>
    %362 = math.tanh %361 : vector<8x32xf32>
    %363 = arith.mulf %358, %362 : vector<8x32xf32>
    %364 = arith.truncf %339 : vector<8x32xf32> to vector<8x32xbf16>
    %365 = arith.truncf %363 : vector<8x32xf32> to vector<8x32xbf16>
    %366 = tpu.concatenate %364, %365 in 1 : vector<8x32xbf16>, vector<8x32xbf16> -> vector<8x64xbf16>
    %cst_73 = arith.constant dense<0.000000e+00> : vector<8x128xf32>
    %367 = tpu.matmul %366, %9, %cst_73 {dimension_numbers = #tpu.dot_dimension_numbers<[1], [0], [0], [1], [0, 0, 1, 1], [], []>} : vector<8x64xbf16>, vector<64x128xbf16>, vector<8x128xf32> -> vector<8x128xf32>
    %368 = vector.broadcast %10 : vector<1x128xf32> to vector<8x128xf32>
    %369 = arith.addf %367, %368 : vector<8x128xf32>
    %370 = arith.negf %369 : vector<8x128xf32>
    %371 = math.exp %370 : vector<8x128xf32>
    %cst_74 = arith.constant 1.000000e+00 : f32
    %372 = vector.broadcast %cst_74 : f32 to vector<8x128xf32>
    %373 = arith.addf %372, %371 : vector<8x128xf32>
    %374 = arith.divf %372, %373 : vector<8x128xf32>
    %375 = vector.extract_strided_slice %374 {offsets = [0, 0], sizes = [8, 32], strides = [1, 1]} : vector<8x128xf32> to vector<8x32xf32>
    %376 = vector.extract_strided_slice %374 {offsets = [0, 32], sizes = [8, 32], strides = [1, 1]} : vector<8x128xf32> to vector<8x32xf32>
    %377 = vector.extract_strided_slice %374 {offsets = [0, 64], sizes = [8, 32], strides = [1, 1]} : vector<8x128xf32> to vector<8x32xf32>
    %cst_75 = arith.constant 2.000000e+00 : f32
    %378 = vector.broadcast %cst_75 : f32 to vector<8x32xf32>
    %379 = arith.mulf %378, %377 : vector<8x32xf32>
    %cst_76 = arith.constant 1.000000e+00 : f32
    %380 = vector.broadcast %cst_76 : f32 to vector<8x32xf32>
    %381 = arith.subf %379, %380 : vector<8x32xf32>
    %382 = vector.extract_strided_slice %374 {offsets = [0, 96], sizes = [8, 32], strides = [1, 1]} : vector<8x128xf32> to vector<8x32xf32>
    %383 = arith.mulf %376, %361 : vector<8x32xf32>
    %384 = arith.mulf %375, %381 : vector<8x32xf32>
    %385 = arith.addf %383, %384 : vector<8x32xf32>
    %386 = math.tanh %385 : vector<8x32xf32>
    %387 = arith.mulf %382, %386 : vector<8x32xf32>
    %388 = arith.truncf %387 : vector<8x32xf32> to vector<8x32xbf16>
    %c0_77 = arith.constant 0 : index
    %c0_78 = arith.constant 0 : index
    %389 = vector.load %arg6[%c0_77, %c0_78] : memref<32x32xbf16, #tpu.memory_space<vmem>>, vector<32x32xbf16>
    %cst_79 = arith.constant dense<0.000000e+00> : vector<8x32xf32>
    %390 = tpu.matmul %388, %389, %cst_79 {dimension_numbers = #tpu.dot_dimension_numbers<[1], [0], [0], [1], [0, 0, 1, 1], [], []>} : vector<8x32xbf16>, vector<32x32xbf16>, vector<8x32xf32> -> vector<8x32xf32>
    %c0_80 = arith.constant 0 : index
    %c0_81 = arith.constant 0 : index
    %391 = vector.load %arg7[%c0_80, %c0_81] : memref<1x32xf32, #tpu.memory_space<vmem>>, vector<1x32xf32>
    %392 = vector.broadcast %391 : vector<1x32xf32> to vector<8x32xf32>
    %393 = arith.addf %390, %392 : vector<8x32xf32>
    %cst_82 = arith.constant 0.000000e+00 : f32
    %394 = vector.broadcast %cst_82 : f32 to vector<8x32xf32>
    %395 = arith.maximumf %393, %394 : vector<8x32xf32>
    %396 = arith.truncf %395 : vector<8x32xf32> to vector<8x32xbf16>
    %c0_83 = arith.constant 0 : index
    %c0_84 = arith.constant 0 : index
    %397 = vector.load %arg8[%c0_83, %c0_84] : memref<32x16xbf16, #tpu.memory_space<vmem>>, vector<32x16xbf16>
    %cst_85 = arith.constant dense<0.000000e+00> : vector<8x16xf32>
    %398 = tpu.matmul %396, %397, %cst_85 {dimension_numbers = #tpu.dot_dimension_numbers<[1], [0], [0], [1], [0, 0, 1, 1], [], []>} : vector<8x32xbf16>, vector<32x16xbf16>, vector<8x16xf32> -> vector<8x16xf32>
    %c0_86 = arith.constant 0 : index
    %c0_87 = arith.constant 0 : index
    %399 = vector.load %arg9[%c0_86, %c0_87] : memref<1x16xf32, #tpu.memory_space<vmem>>, vector<1x16xf32>
    %400 = vector.broadcast %399 : vector<1x16xf32> to vector<8x16xf32>
    %401 = arith.addf %398, %400 : vector<8x16xf32>
    %cst_88 = arith.constant 0.000000e+00 : f32
    %402 = vector.broadcast %cst_88 : f32 to vector<8x16xf32>
    %403 = arith.maximumf %401, %402 : vector<8x16xf32>
    %404 = arith.truncf %403 : vector<8x16xf32> to vector<8x16xbf16>
    %c0_89 = arith.constant 0 : index
    %c0_90 = arith.constant 0 : index
    %405 = vector.load %arg10[%c0_89, %c0_90] : memref<16x1xbf16, #tpu.memory_space<vmem>>, vector<16x1xbf16>
    %cst_91 = arith.constant dense<0.000000e+00> : vector<8x1xf32>
    %406 = tpu.matmul %404, %405, %cst_91 {dimension_numbers = #tpu.dot_dimension_numbers<[1], [0], [0], [1], [0, 0, 1, 1], [], []>} : vector<8x16xbf16>, vector<16x1xbf16>, vector<8x1xf32> -> vector<8x1xf32>
    %c0_92 = arith.constant 0 : index
    %c0_93 = arith.constant 0 : index
    %407 = vector.load %arg11[%c0_92, %c0_93] : memref<1x1xf32, #tpu.memory_space<vmem>>, vector<1x1xf32>
    %408 = vector.broadcast %407 : vector<1x1xf32> to vector<8x1xf32>
    %409 = arith.addf %406, %408 : vector<8x1xf32>
    %410 = arith.negf %409 : vector<8x1xf32>
    %411 = math.exp %410 : vector<8x1xf32>
    %cst_94 = arith.constant 1.000000e+00 : f32
    %412 = vector.broadcast %cst_94 : f32 to vector<8x1xf32>
    %413 = arith.addf %412, %411 : vector<8x1xf32>
    %414 = arith.divf %412, %413 : vector<8x1xf32>
    %c0_95 = arith.constant 0 : index
    %c0_96 = arith.constant 0 : index
    %415 = vector.load %arg12[%c0_95, %c0_96] : memref<8x1xf32, #tpu.memory_space<vmem>>, vector<8x1xf32>
    tpu.vector_store %arg12[%c0_95, %c0_96], %414 {strides = array<i32>} : memref<8x1xf32, #tpu.memory_space<vmem>>, vector<8x1xf32>,
    return
  }
}

</mosaic_0001>

<llo_original>
// kernel: lstm_forward.1
$region0: #{lstm_forward.1}
  #allocation0 [shape = 'u32[]', space=smem, size = 0x4, offset = 0x4, fixed_abs, tag = 'smem constant byte address 0x4 - core index']
  #allocation1 [shape = 'u32[144,128]{1,0:T(1,128)}', space=vmem, size = 0x12000, scoped, tag = 'internal scratch']
  #allocation2 [shape = 'f32[1,1]{1,0:T(1,128)S(1)}', space=vmem, size = 0x200, scoped, tag = 'scoped memory for lstm_forward.1']
  %s0 = inlined_call_operand.vmem [shape: bf16[8,8,16], index: 0, kind: input, shape index: {}]
  %s1 = inlined_call_operand.vmem [shape: bf16[16,128], index: 1, kind: input, shape index: {}]
  %s2 = inlined_call_operand.vmem [shape: bf16[32,128], index: 2, kind: input, shape index: {}]
  %s3 = inlined_call_operand.vmem [shape: f32[1,128], index: 3, kind: input, shape index: {}]
  %s4 = inlined_call_operand.vmem [shape: bf16[64,128], index: 4, kind: input, shape index: {}]
  %s5 = inlined_call_operand.vmem [shape: f32[1,128], index: 5, kind: input, shape index: {}]
  %s6 = inlined_call_operand.vmem [shape: bf16[32,32], index: 6, kind: input, shape index: {}]
  %s7 = inlined_call_operand.vmem [shape: f32[1,32], index: 7, kind: input, shape index: {}]
  %s8 = inlined_call_operand.vmem [shape: bf16[32,16], index: 8, kind: input, shape index: {}]
  %s9 = inlined_call_operand.vmem [shape: f32[1,16], index: 9, kind: input, shape index: {}]
  %s10 = inlined_call_operand.vmem [shape: bf16[16,1], index: 10, kind: input, shape index: {}]
  %s11 = inlined_call_operand.<no memory space> [shape: f32[1,1], index: 11, kind: input, shape index: {}]
  %s12 = inlined_call_operand.vmem [shape: f32[8,1], index: 12, kind: output, shape index: {}]
  %s13 = sld [smem:[#allocation0]]
  $region58: #{lstm_forward.1} parent=0
    _
  %s15 = ssub.s32 1, %s13
  %s16 = scalar_select 0, %s15, %s13
  %v17 = vstv %s11
  %18 = vst [vmem:[#allocation2] sm:$0x1] %v17
  // Predicated region
  $region2: #{lstm_forward.1} parent=0 // pred_check
    _
  $region3: #{lstm_forward.1} parent=0 // pred_check_branch
    %20 = sbr.rel (0) target = $region5
  $region4: #{lstm_forward.1} parent=0 // pred_region
    _
  $region5: #{lstm_forward.1} parent=0 // pred_fallthru
    _
  // Predicated region
  $region6: #{lstm_forward.1} parent=0 // pred_check
    _
  $region7: #{lstm_forward.1} parent=0 // pred_check_branch
    %22 = sbr.rel (0) target = $region9
  $region8: #{lstm_forward.1} parent=0 // pred_region
    _
  $region9: #{lstm_forward.1} parent=0 // pred_fallthru
    _
  // Predicated region
  $region10: #{lstm_forward.1} parent=0 // pred_check
    _
  $region11: #{lstm_forward.1} parent=0 // pred_check_branch
    %24 = sbr.rel (0) target = $region13
  $region12: #{lstm_forward.1} parent=0 // pred_region
    _
  $region13: #{lstm_forward.1} parent=0 // pred_fallthru
    _
  // Predicated region
  $region14: #{lstm_forward.1} parent=0 // pred_check
    _
  $region15: #{lstm_forward.1} parent=0 // pred_check_branch
    %26 = sbr.rel (0) target = $region17
  $region16: #{lstm_forward.1} parent=0 // pred_region
    _
  $region17: #{lstm_forward.1} parent=0 // pred_fallthru
    _
  // Predicated region
  $region18: #{lstm_forward.1} parent=0 // pred_check
    _
  $region19: #{lstm_forward.1} parent=0 // pred_check_branch
    %28 = sbr.rel (0) target = $region21
  $region20: #{lstm_forward.1} parent=0 // pred_region
    _
  $region21: #{lstm_forward.1} parent=0 // pred_fallthru
    _
  // Predicated region
  $region22: #{lstm_forward.1} parent=0 // pred_check
    _
  $region23: #{lstm_forward.1} parent=0 // pred_check_branch
    %30 = sbr.rel (0) target = $region25
  $region24: #{lstm_forward.1} parent=0 // pred_region
    _
  $region25: #{lstm_forward.1} parent=0 // pred_fallthru
    _
  // Predicated region
  $region26: #{lstm_forward.1} parent=0 // pred_check
    _
  $region27: #{lstm_forward.1} parent=0 // pred_check_branch
    %32 = sbr.rel (0) target = $region29
  $region28: #{lstm_forward.1} parent=0 // pred_region
    _
  $region29: #{lstm_forward.1} parent=0 // pred_fallthru
    _
  // Predicated region
  $region30: #{lstm_forward.1} parent=0 // pred_check
    _
  $region31: #{lstm_forward.1} parent=0 // pred_check_branch
    %34 = sbr.rel (0) target = $region33
  $region32: #{lstm_forward.1} parent=0 // pred_region
    _
  $region33: #{lstm_forward.1} parent=0 // pred_fallthru
    _
  // Predicated region
  $region34: #{lstm_forward.1} parent=0 // pred_check
    _
  $region35: #{lstm_forward.1} parent=0 // pred_check_branch
    %36 = sbr.rel (0) target = $region37
  $region36: #{lstm_forward.1} parent=0 // pred_region
    _
  $region37: #{lstm_forward.1} parent=0 // pred_fallthru
    _
  // Predicated region
  $region38: #{lstm_forward.1} parent=0 // pred_check
    _
  $region39: #{lstm_forward.1} parent=0 // pred_check_branch
    %38 = sbr.rel (0) target = $region41
  $region40: #{lstm_forward.1} parent=0 // pred_region
    _
  $region41: #{lstm_forward.1} parent=0 // pred_fallthru
    _
  // Predicated region
  $region42: #{lstm_forward.1} parent=0 // pred_check
    _
  $region43: #{lstm_forward.1} parent=0 // pred_check_branch
    %40 = sbr.rel (0) target = $region45
  $region44: #{lstm_forward.1} parent=0 // pred_region
    _
  $region45: #{lstm_forward.1} parent=0 // pred_fallthru
    _
  // Predicated region
  $region46: #{lstm_forward.1} parent=0 // pred_check
    _
  $region47: #{lstm_forward.1} parent=0 // pred_check_branch
    %42 = sbr.rel (0) target = $region49
  $region48: #{lstm_forward.1} parent=0 // pred_region
    _
  $region49: #{lstm_forward.1} parent=0 // pred_fallthru
    _
  %v44 = vld [vmem:[%s0] sm:$0xf]
  %v45 = vld [vmem:[%s0 + $0x4] sm:$0xf]
  %v46 = vld [vmem:[%s0 + $0x8] sm:$0xf]
  %v47 = vld [vmem:[%s0 + $0xc] sm:$0xf]
  %v48 = vld [vmem:[%s0 + $0x10] sm:$0xf]
  %v49 = vld [vmem:[%s0 + $0x14] sm:$0xf]
  %v50 = vld [vmem:[%s0 + $0x18] sm:$0xf]
  %v51 = vld [vmem:[%s0 + $0x1c] sm:$0xf]
  %v52 = vld [vmem:[%s1] sm:$0xf]
  %v53 = vld [vmem:[%s1 + $0x4] sm:$0xf]
  %v54 = vld [vmem:[%s3] sm:$0x1]
  %v56 = vlaneseq
  %v57 = vshrl.u32 %v56, 7
  %v58 = vsub.s32 0, %v57
  %v59 = vrot.slane %v54, %v58
  %v69 = vunpack.c.l.b16 %v44
  %v70 = vunpack.c.l.b16 %v45
  %v71 = vunpack.c.l.b16 %v46
  %v72 = vunpack.c.l.b16 %v47
  %v73 = vunpack.c.l.b16 %v48
  %v74 = vunpack.c.l.b16 %v49
  %v75 = vunpack.c.l.b16 %v50
  %v76 = vunpack.c.l.b16 %v51
  %v77 = vpack.c.b16 %v70, %v69
  %v78 = vpack.c.b16 %v72, %v71
  %v79 = vpack.c.b16 %v74, %v73
  %v80 = vpack.c.b16 %v76, %v75
  %v83 = vunpack.c.l.b16 %v52
  %v84 = vunpack.c.l.b16 %v53
  %v85 = vpack.c.b16 %v84, %v83
  %vm87 = vcmask 130048
  %v89 = vsel %vm87, %v77, 0
  %v92 = vsel %vm87, %v78, 0
  %v95 = vsel %vm87, %v79, 0
  %v98 = vsel %vm87, %v80, 0
  %100 = vmatprep.subr.bf16.mxu0 0
  %101 = vmatpush1.bf16.msra.mxu0 %v85
  %102 = vmatprep.subr.bf16.mxu0 0
  %103 = vmatpush1.bf16.msra.mxu0 0
  %104 = vmatprep.subr.bf16.mxu0 0
  %105 = vmatpush1.bf16.msra.mxu0 0
  %106 = vmatprep.subr.bf16.mxu0 0
  %107 = vmatpush1.bf16.msra.mxu0 0
  %108 = vmatprep.subr.bf16.mxu0 0
  %109 = vmatpush1.bf16.msra.mxu0 0
  %110 = vmatprep.subr.bf16.mxu0 0
  %111 = vmatpush1.bf16.msra.mxu0 0
  %112 = vmatprep.subr.bf16.mxu0 0
  %113 = vmatpush1.bf16.msra.mxu0 0
  %114 = vmatprep.subr.bf16.mxu0 0
  %115 = vmatpush1.bf16.msra.mxu0 0
  %116 = vmatprep.subr.bf16.mxu0 0
  %117 = vmatpush1.bf16.msra.mxu0 0
  %118 = vmatprep.subr.bf16.mxu0 0
  %119 = vmatpush1.bf16.msra.mxu0 0
  %120 = vmatprep.subr.bf16.mxu0 0
  %121 = vmatpush1.bf16.msra.mxu0 0
  %122 = vmatprep.subr.bf16.mxu0 0
  %123 = vmatpush1.bf16.msra.mxu0 0
  %124 = vmatprep.subr.bf16.mxu0 0
  %125 = vmatpush1.bf16.msra.mxu0 0
  %126 = vmatprep.subr.bf16.mxu0 0
  %127 = vmatpush1.bf16.msra.mxu0 0
  %128 = vmatprep.subr.bf16.mxu0 0
  %129 = vmatpush1.bf16.msra.mxu0 0
  %130 = vmatprep.subr.bf16.mxu0 0
  %131 = vmatpush1.bf16.msra.mxu0 0
  %132 = vmatprep.mubr.bf16.mxu0 0
  %133 = vmatmul.mubr.bf16.gmra.mrb[0].mxu0 %v89
  %v134 = vpop.f32.mrb[0].mxu0
  %v135 = vadd.f32 %v59, %v134
  %v136 = vpop.f32.mrb[0].mxu0
  %v137 = vpop.f32.mrb[0].mxu0
  %v138 = vadd.f32 %v59, %v137
  %v139 = vpop.f32.mrb[0].mxu0
  %140 = vmatprep.mubr.bf16.mxu0 0
  %141 = vmatmul.mubr.bf16.gmra.mrb[0].mxu0 %v92
  %v142 = vpop.f32.mrb[0].mxu0
  %v143 = vadd.f32 %v59, %v142
  %v144 = vpop.f32.mrb[0].mxu0
  %v145 = vpop.f32.mrb[0].mxu0
  %v146 = vadd.f32 %v59, %v145
  %v147 = vpop.f32.mrb[0].mxu0
  %148 = vmatprep.mubr.bf16.mxu0 0
  %149 = vmatmul.mubr.bf16.gmra.mrb[0].mxu0 %v95
  %v150 = vpop.f32.mrb[0].mxu0
  %v151 = vadd.f32 %v59, %v150
  %v152 = vpop.f32.mrb[0].mxu0
  %v153 = vpop.f32.mrb[0].mxu0
  %v154 = vadd.f32 %v59, %v153
  %v155 = vpop.f32.mrb[0].mxu0
  %156 = vmatprep.mubr.bf16.mxu0 0
  %157 = vmatmul.mubr.bf16.gmra.mrb[0].mxu0 %v98
  %v158 = vpop.f32.mrb[0].mxu0
  %v159 = vadd.f32 %v59, %v158
  %v160 = vpop.f32.mrb[0].mxu0
  %v161 = vpop.f32.mrb[0].mxu0
  %v162 = vadd.f32 %v59, %v161
  %v163 = vpop.f32.mrb[0].mxu0
  %164 = vdwg.mxu0
  %v165 = vld [vmem:[%s2] sm:$0xf]
  %v166 = vld [vmem:[%s2 + $0x4] sm:$0xf]
  %v167 = vld [vmem:[%s2 + $0x8] sm:$0xf]
  %v168 = vld [vmem:[%s2 + $0xc] sm:$0xf]
  %v169 = vld [vmem:[%s4] sm:$0xf]
  %v170 = vld [vmem:[%s4 + $0x4] sm:$0xf]
  %v171 = vld [vmem:[%s4 + $0x8] sm:$0xf]
  %v172 = vld [vmem:[%s4 + $0xc] sm:$0xf]
  %v173 = vld [vmem:[%s4 + $0x10] sm:$0xf]
  %v174 = vld [vmem:[%s4 + $0x14] sm:$0xf]
  %v175 = vld [vmem:[%s4 + $0x18] sm:$0xf]
  %v176 = vld [vmem:[%s4 + $0x1c] sm:$0xf]
  %v177 = vld [vmem:[%s5] sm:$0x1]
  %v182 = vunpack.c.l.b16 %v165
  %v183 = vunpack.c.l.b16 %v166
  %v184 = vunpack.c.l.b16 %v167
  %v185 = vunpack.c.l.b16 %v168
  %v186 = vpack.c.b16 %v183, %v182
  %v187 = vpack.c.b16 %v185, %v184
  %vm190 = vcmask 261120
  %v192 = vsel %vm190, 0, 0
  %194 = vmatprep.subr.bf16.mxu0 0
  %195 = vmatpush1.bf16.msra.mxu0 %v186
  %196 = vmatprep.subr.bf16.mxu0 0
  %197 = vmatpush1.bf16.msra.mxu0 %v187
  %198 = vmatprep.subr.bf16.mxu0 0
  %199 = vmatpush1.bf16.msra.mxu0 0
  %200 = vmatprep.subr.bf16.mxu0 0
  %201 = vmatpush1.bf16.msra.mxu0 0
  %202 = vmatprep.subr.bf16.mxu0 0
  %203 = vmatpush1.bf16.msra.mxu0 0
  %204 = vmatprep.subr.bf16.mxu0 0
  %205 = vmatpush1.bf16.msra.mxu0 0
  %206 = vmatprep.subr.bf16.mxu0 0
  %207 = vmatpush1.bf16.msra.mxu0 0
  %208 = vmatprep.subr.bf16.mxu0 0
  %209 = vmatpush1.bf16.msra.mxu0 0
  %210 = vmatprep.subr.bf16.mxu0 0
  %211 = vmatpush1.bf16.msra.mxu0 0
  %212 = vmatprep.subr.bf16.mxu0 0
  %213 = vmatpush1.bf16.msra.mxu0 0
  %214 = vmatprep.subr.bf16.mxu0 0
  %215 = vmatpush1.bf16.msra.mxu0 0
  %216 = vmatprep.subr.bf16.mxu0 0
  %217 = vmatpush1.bf16.msra.mxu0 0
  %218 = vmatprep.subr.bf16.mxu0 0
  %219 = vmatpush1.bf16.msra.mxu0 0
  %220 = vmatprep.subr.bf16.mxu0 0
  %221 = vmatpush1.bf16.msra.mxu0 0
  %222 = vmatprep.subr.bf16.mxu0 0
  %223 = vmatpush1.bf16.msra.mxu0 0
  %224 = vmatprep.subr.bf16.mxu0 0
  %225 = vmatpush1.bf16.msra.mxu0 0
  %226 = vmatprep.mubr.bf16.mxu0 0
  %227 = vmatmul.mubr.bf16.gmra.mrb[0].mxu0 %v192
  %v228 = vpop.f32.mrb[0].mxu0
  %v229 = vadd.f32 0.0, %v228
  %v230 = vpop.f32.mrb[0].mxu0
  %v231 = vpop.f32.mrb[0].mxu0
  %v232 = vpop.f32.mrb[0].mxu0
  %233 = vdwg.mxu0
  %v234 = vadd.f32 %v135, %v229
  %v235 = vxor.u32 %v234, 2147483648
  %v236 = vmul.f32 %v235, 1.442695
  %v237 = vpow.pop %v236
  %v238 = vadd.f32 %v237, 1.0
  %v239 = vrcp.pop %v238
  %v240 = vmul.f32 1.0, %v239
  %v241 = vmul.f32 %v240, 2.0
  %v242 = vsub.f32 %v241, 1.0
  %v243 = vmul.f32 %v240, 0.0
  %245 = vrot.lane.b32.xlu0 %v242, 64
  %v246 = vpop.permute.xlu0 %245
  %v248 = vmul.f32 %v240, %v246
  %250 = vrot.lane.b32.xlu0 %v248, 32
  %v251 = vpop.permute.xlu0 %250
  %v253 = vadd.f32 %v243, %v251
  %v254 = vtanh.pop %v253
  %256 = vrot.lane.b32.xlu0 %v254, 64
  %v257 = vpop.permute.xlu0 %256
  %v259 = vmul.f32 %v240, %v257
  %v260 = vpack.c.bf16 %v259, %v259
  %262 = vrot.lane.b32.xlu0 %v260, 32
  %v263 = vpop.permute.xlu0 %262
  %v265 = vsel %vm190, %v263, 0
  %267 = vmatprep.subr.bf16.mxu0 0
  %268 = vmatpush1.bf16.msra.mxu0 %v186
  %269 = vmatprep.subr.bf16.mxu0 0
  %270 = vmatpush1.bf16.msra.mxu0 %v187
  %271 = vmatprep.subr.bf16.mxu0 0
  %272 = vmatpush1.bf16.msra.mxu0 0
  %273 = vmatprep.subr.bf16.mxu0 0
  %274 = vmatpush1.bf16.msra.mxu0 0
  %275 = vmatprep.subr.bf16.mxu0 0
  %276 = vmatpush1.bf16.msra.mxu0 0
  %277 = vmatprep.subr.bf16.mxu0 0
  %278 = vmatpush1.bf16.msra.mxu0 0
  %279 = vmatprep.subr.bf16.mxu0 0
  %280 = vmatpush1.bf16.msra.mxu0 0
  %281 = vmatprep.subr.bf16.mxu0 0
  %282 = vmatpush1.bf16.msra.mxu0 0
  %283 = vmatprep.subr.bf16.mxu0 0
  %284 = vmatpush1.bf16.msra.mxu0 0
  %285 = vmatprep.subr.bf16.mxu0 0
  %286 = vmatpush1.bf16.msra.mxu0 0
  %287 = vmatprep.subr.bf16.mxu0 0
  %288 = vmatpush1.bf16.msra.mxu0 0
  %289 = vmatprep.subr.bf16.mxu0 0
  %290 = vmatpush1.bf16.msra.mxu0 0
  %291 = vmatprep.subr.bf16.mxu0 0
  %292 = vmatpush1.bf16.msra.mxu0 0
  %293 = vmatprep.subr.bf16.mxu0 0
  %294 = vmatpush1.bf16.msra.mxu0 0
  %295 = vmatprep.subr.bf16.mxu0 0
  %296 = vmatpush1.bf16.msra.mxu0 0
  %297 = vmatprep.subr.bf16.mxu0 0
  %298 = vmatpush1.bf16.msra.mxu0 0
  %299 = vmatprep.mubr.bf16.mxu0 0
  %300 = vmatmul.mubr.bf16.gmra.mrb[0].mxu0 %v265
  %v301 = vpop.f32.mrb[0].mxu0
  %v302 = vadd.f32 0.0, %v301
  %v303 = vpop.f32.mrb[0].mxu0
  %v304 = vpop.f32.mrb[0].mxu0
  %v305 = vpop.f32.mrb[0].mxu0
  %306 = vdwg.mxu0
  %v307 = vadd.f32 %v138, %v302
  %v308 = vxor.u32 %v307, 2147483648
  %v309 = vmul.f32 %v308, 1.442695
  %v310 = vpow.pop %v309
  %v311 = vadd.f32 %v310, 1.0
  %v312 = vrcp.pop %v311
  %v313 = vmul.f32 1.0, %v312
  %v314 = vmul.f32 %v313, 2.0
  %v315 = vsub.f32 %v314, 1.0
  %v316 = vmul.f32 %v313, %v253
  %318 = vrot.lane.b32.xlu0 %v315, 64
  %v319 = vpop.permute.xlu0 %318
  %v321 = vmul.f32 %v313, %v319
  %323 = vrot.lane.b32.xlu0 %v321, 32
  %v324 = vpop.permute.xlu0 %323
  %v326 = vadd.f32 %v316, %v324
  %v327 = vtanh.pop %v326
  %329 = vrot.lane.b32.xlu0 %v327, 64
  %v330 = vpop.permute.xlu0 %329
  %v332 = vmul.f32 %v313, %v330
  %v333 = vsel %vm190, %v263, 0
  %v335 = vlaneseq
  %v336 = vshrl.u32 %v335, 7
  %v337 = vsub.s32 0, %v336
  %v338 = vrot.slane %v177, %v337
  %v348 = vunpack.c.l.b16 %v169
  %v349 = vunpack.c.l.b16 %v170
  %v350 = vunpack.c.l.b16 %v171
  %v351 = vunpack.c.l.b16 %v172
  %v352 = vunpack.c.l.b16 %v173
  %v353 = vunpack.c.l.b16 %v174
  %v354 = vunpack.c.l.b16 %v175
  %v355 = vunpack.c.l.b16 %v176
  %v356 = vpack.c.b16 %v349, %v348
  %v357 = vpack.c.b16 %v351, %v350
  %v358 = vpack.c.b16 %v353, %v352
  %v359 = vpack.c.b16 %v355, %v354
  %vm364 = vcmask 523264
  %v365 = vsel %vm364, %v333, 0
  %367 = vmatprep.subr.bf16.mxu0 0
  %368 = vmatpush1.bf16.msra.mxu0 %v356
  %369 = vmatprep.subr.bf16.mxu0 0
  %370 = vmatpush1.bf16.msra.mxu0 %v357
  %371 = vmatprep.subr.bf16.mxu0 0
  %372 = vmatpush1.bf16.msra.mxu0 %v358
  %373 = vmatprep.subr.bf16.mxu0 0
  %374 = vmatpush1.bf16.msra.mxu0 %v359
  %375 = vmatprep.subr.bf16.mxu0 0
  %376 = vmatpush1.bf16.msra.mxu0 0
  %377 = vmatprep.subr.bf16.mxu0 0
  %378 = vmatpush1.bf16.msra.mxu0 0
  %379 = vmatprep.subr.bf16.mxu0 0
  %380 = vmatpush1.bf16.msra.mxu0 0
  %381 = vmatprep.subr.bf16.mxu0 0
  %382 = vmatpush1.bf16.msra.mxu0 0
  %383 = vmatprep.subr.bf16.mxu0 0
  %384 = vmatpush1.bf16.msra.mxu0 0
  %385 = vmatprep.subr.bf16.mxu0 0
  %386 = vmatpush1.bf16.msra.mxu0 0
  %387 = vmatprep.subr.bf16.mxu0 0
  %388 = vmatpush1.bf16.msra.mxu0 0
  %389 = vmatprep.subr.bf16.mxu0 0
  %390 = vmatpush1.bf16.msra.mxu0 0
  %391 = vmatprep.subr.bf16.mxu0 0
  %392 = vmatpush1.bf16.msra.mxu0 0
  %393 = vmatprep.subr.bf16.mxu0 0
  %394 = vmatpush1.bf16.msra.mxu0 0
  %395 = vmatprep.subr.bf16.mxu0 0
  %396 = vmatpush1.bf16.msra.mxu0 0
  %397 = vmatprep.subr.bf16.mxu0 0
  %398 = vmatpush1.bf16.msra.mxu0 0
  %399 = vmatprep.mubr.bf16.mxu0 0
  %400 = vmatmul.mubr.bf16.gmra.mrb[0].mxu0 %v365
  %v401 = vpop.f32.mrb[0].mxu0
  %v402 = vadd.f32 %v338, %v401
  %v403 = vpop.f32.mrb[0].mxu0
  %v404 = vpop.f32.mrb[0].mxu0
  %v405 = vpop.f32.mrb[0].mxu0
  %406 = vdwg.mxu0
  %v407 = vxor.u32 %v402, 2147483648
  %v408 = vmul.f32 %v407, 1.442695
  %v409 = vpow.pop %v408
  %v410 = vadd.f32 %v409, 1.0
  %v411 = vrcp.pop %v410
  %v412 = vmul.f32 1.0, %v411
  %v413 = vmul.f32 %v412, 2.0
  %v414 = vsub.f32 %v413, 1.0
  %v415 = vmul.f32 %v412, 0.0
  %417 = vrot.lane.b32.xlu0 %v414, 64
  %v418 = vpop.permute.xlu0 %417
  %v420 = vmul.f32 %v412, %v418
  %422 = vrot.lane.b32.xlu0 %v420, 32
  %v423 = vpop.permute.xlu0 %422
  %v425 = vadd.f32 %v415, %v423
  %v426 = vtanh.pop %v425
  %428 = vrot.lane.b32.xlu0 %v426, 64
  %v429 = vpop.permute.xlu0 %428
  %v431 = vmul.f32 %v412, %v429
  %v432 = vpack.c.bf16 %v332, %v332
  %434 = vrot.lane.b32.xlu0 %v432, 32
  %v435 = vpop.permute.xlu0 %434
  %v437 = vsel %vm190, %v435, 0
  %439 = vmatprep.subr.bf16.mxu0 0
  %440 = vmatpush1.bf16.msra.mxu0 %v186
  %441 = vmatprep.subr.bf16.mxu0 0
  %442 = vmatpush1.bf16.msra.mxu0 %v187
  %443 = vmatprep.subr.bf16.mxu0 0
  %444 = vmatpush1.bf16.msra.mxu0 0
  %445 = vmatprep.subr.bf16.mxu0 0
  %446 = vmatpush1.bf16.msra.mxu0 0
  %447 = vmatprep.subr.bf16.mxu0 0
  %448 = vmatpush1.bf16.msra.mxu0 0
  %449 = vmatprep.subr.bf16.mxu0 0
  %450 = vmatpush1.bf16.msra.mxu0 0
  %451 = vmatprep.subr.bf16.mxu0 0
  %452 = vmatpush1.bf16.msra.mxu0 0
  %453 = vmatprep.subr.bf16.mxu0 0
  %454 = vmatpush1.bf16.msra.mxu0 0
  %455 = vmatprep.subr.bf16.mxu0 0
  %456 = vmatpush1.bf16.msra.mxu0 0
  %457 = vmatprep.subr.bf16.mxu0 0
  %458 = vmatpush1.bf16.msra.mxu0 0
  %459 = vmatprep.subr.bf16.mxu0 0
  %460 = vmatpush1.bf16.msra.mxu0 0
  %461 = vmatprep.subr.bf16.mxu0 0
  %462 = vmatpush1.bf16.msra.mxu0 0
  %463 = vmatprep.subr.bf16.mxu0 0
  %464 = vmatpush1.bf16.msra.mxu0 0
  %465 = vmatprep.subr.bf16.mxu0 0
  %466 = vmatpush1.bf16.msra.mxu0 0
  %467 = vmatprep.subr.bf16.mxu0 0
  %468 = vmatpush1.bf16.msra.mxu0 0
  %469 = vmatprep.subr.bf16.mxu0 0
  %470 = vmatpush1.bf16.msra.mxu0 0
  %471 = vmatprep.mubr.bf16.mxu0 0
  %472 = vmatmul.mubr.bf16.gmra.mrb[0].mxu0 %v437
  %v473 = vpop.f32.mrb[0].mxu0
  %v474 = vadd.f32 0.0, %v473
  %v475 = vpop.f32.mrb[0].mxu0
  %v476 = vpop.f32.mrb[0].mxu0
  %v477 = vpop.f32.mrb[0].mxu0
  %478 = vdwg.mxu0
  %v479 = vadd.f32 %v143, %v474
  %v480 = vxor.u32 %v479, 2147483648
  %v481 = vmul.f32 %v480, 1.442695
  %v482 = vpow.pop %v481
  %v483 = vadd.f32 %v482, 1.0
  %v484 = vrcp.pop %v483
  %v485 = vmul.f32 1.0, %v484
  %v486 = vmul.f32 %v485, 2.0
  %v487 = vsub.f32 %v486, 1.0
  %v488 = vmul.f32 %v485, %v326
  %490 = vrot.lane.b32.xlu0 %v487, 64
  %v491 = vpop.permute.xlu0 %490
  %v493 = vmul.f32 %v485, %v491
  %495 = vrot.lane.b32.xlu0 %v493, 32
  %v496 = vpop.permute.xlu0 %495
  %v498 = vadd.f32 %v488, %v496
  %v499 = vtanh.pop %v498
  %501 = vrot.lane.b32.xlu0 %v499, 64
  %v502 = vpop.permute.xlu0 %501
  %v504 = vmul.f32 %v485, %v502
  %v505 = vpack.c.bf16 %v431, %v431
  %507 = vrot.lane.b32.xlu0 %v505, 64
  %v508 = vpop.permute.xlu0 %507
  %v510 = vsel %vm190, %v435, %v508
  %v511 = vsel %vm364, %v510, 0
  %513 = vmatprep.subr.bf16.mxu0 0
  %514 = vmatpush1.bf16.msra.mxu0 %v356
  %515 = vmatprep.subr.bf16.mxu0 0
  %516 = vmatpush1.bf16.msra.mxu0 %v357
  %517 = vmatprep.subr.bf16.mxu0 0
  %518 = vmatpush1.bf16.msra.mxu0 %v358
  %519 = vmatprep.subr.bf16.mxu0 0
  %520 = vmatpush1.bf16.msra.mxu0 %v359
  %521 = vmatprep.subr.bf16.mxu0 0
  %522 = vmatpush1.bf16.msra.mxu0 0
  %523 = vmatprep.subr.bf16.mxu0 0
  %524 = vmatpush1.bf16.msra.mxu0 0
  %525 = vmatprep.subr.bf16.mxu0 0
  %526 = vmatpush1.bf16.msra.mxu0 0
  %527 = vmatprep.subr.bf16.mxu0 0
  %528 = vmatpush1.bf16.msra.mxu0 0
  %529 = vmatprep.subr.bf16.mxu0 0
  %530 = vmatpush1.bf16.msra.mxu0 0
  %531 = vmatprep.subr.bf16.mxu0 0
  %532 = vmatpush1.bf16.msra.mxu0 0
  %533 = vmatprep.subr.bf16.mxu0 0
  %534 = vmatpush1.bf16.msra.mxu0 0
  %535 = vmatprep.subr.bf16.mxu0 0
  %536 = vmatpush1.bf16.msra.mxu0 0
  %537 = vmatprep.subr.bf16.mxu0 0
  %538 = vmatpush1.bf16.msra.mxu0 0
  %539 = vmatprep.subr.bf16.mxu0 0
  %540 = vmatpush1.bf16.msra.mxu0 0
  %541 = vmatprep.subr.bf16.mxu0 0
  %542 = vmatpush1.bf16.msra.mxu0 0
  %543 = vmatprep.subr.bf16.mxu0 0
  %544 = vmatpush1.bf16.msra.mxu0 0
  %545 = vmatprep.mubr.bf16.mxu0 0
  %546 = vmatmul.mubr.bf16.gmra.mrb[0].mxu0 %v511
  %v547 = vpop.f32.mrb[0].mxu0
  %v548 = vadd.f32 %v338, %v547
  %v549 = vpop.f32.mrb[0].mxu0
  %v550 = vpop.f32.mrb[0].mxu0
  %v551 = vpop.f32.mrb[0].mxu0
  %552 = vdwg.mxu0
  %v553 = vxor.u32 %v548, 2147483648
  %v554 = vmul.f32 %v553, 1.442695
  %v555 = vpow.pop %v554
  %v556 = vadd.f32 %v555, 1.0
  %v557 = vrcp.pop %v556
  %v558 = vmul.f32 1.0, %v557
  %v559 = vmul.f32 %v558, 2.0
  %v560 = vsub.f32 %v559, 1.0
  %v561 = vmul.f32 %v558, %v425
  %563 = vrot.lane.b32.xlu0 %v560, 64
  %v564 = vpop.permute.xlu0 %563
  %v566 = vmul.f32 %v558, %v564
  %568 = vrot.lane.b32.xlu0 %v566, 32
  %v569 = vpop.permute.xlu0 %568
  %v571 = vadd.f32 %v561, %v569
  %v572 = vtanh.pop %v571
  %574 = vrot.lane.b32.xlu0 %v572, 64
  %v575 = vpop.permute.xlu0 %574
  %v577 = vmul.f32 %v558, %v575
  %v578 = vpack.c.bf16 %v504, %v504
  %580 = vrot.lane.b32.xlu0 %v578, 32
  %v581 = vpop.permute.xlu0 %580
  %v583 = vsel %vm190, %v581, 0
  %585 = vmatprep.subr.bf16.mxu0 0
  %586 = vmatpush1.bf16.msra.mxu0 %v186
  %587 = vmatprep.subr.bf16.mxu0 0
  %588 = vmatpush1.bf16.msra.mxu0 %v187
  %589 = vmatprep.subr.bf16.mxu0 0
  %590 = vmatpush1.bf16.msra.mxu0 0
  %591 = vmatprep.subr.bf16.mxu0 0
  %592 = vmatpush1.bf16.msra.mxu0 0
  %593 = vmatprep.subr.bf16.mxu0 0
  %594 = vmatpush1.bf16.msra.mxu0 0
  %595 = vmatprep.subr.bf16.mxu0 0
  %596 = vmatpush1.bf16.msra.mxu0 0
  %597 = vmatprep.subr.bf16.mxu0 0
  %598 = vmatpush1.bf16.msra.mxu0 0
  %599 = vmatprep.subr.bf16.mxu0 0
  %600 = vmatpush1.bf16.msra.mxu0 0
  %601 = vmatprep.subr.bf16.mxu0 0
  %602 = vmatpush1.bf16.msra.mxu0 0
  %603 = vmatprep.subr.bf16.mxu0 0
  %604 = vmatpush1.bf16.msra.mxu0 0
  %605 = vmatprep.subr.bf16.mxu0 0
  %606 = vmatpush1.bf16.msra.mxu0 0
  %607 = vmatprep.subr.bf16.mxu0 0
  %608 = vmatpush1.bf16.msra.mxu0 0
  %609 = vmatprep.subr.bf16.mxu0 0
  %610 = vmatpush1.bf16.msra.mxu0 0
  %611 = vmatprep.subr.bf16.mxu0 0
  %612 = vmatpush1.bf16.msra.mxu0 0
  %613 = vmatprep.subr.bf16.mxu0 0
  %614 = vmatpush1.bf16.msra.mxu0 0
  %615 = vmatprep.subr.bf16.mxu0 0
  %616 = vmatpush1.bf16.msra.mxu0 0
  %617 = vmatprep.mubr.bf16.mxu0 0
  %618 = vmatmul.mubr.bf16.gmra.mrb[0].mxu0 %v583
  %v619 = vpop.f32.mrb[0].mxu0
  %v620 = vadd.f32 0.0, %v619
  %v621 = vpop.f32.mrb[0].mxu0
  %v622 = vpop.f32.mrb[0].mxu0
  %v623 = vpop.f32.mrb[0].mxu0
  %624 = vdwg.mxu0
  %v625 = vadd.f32 %v146, %v620
  %v626 = vxor.u32 %v625, 2147483648
  %v627 = vmul.f32 %v626, 1.442695
  %v628 = vpow.pop %v627
  %v629 = vadd.f32 %v628, 1.0
  %v630 = vrcp.pop %v629
  %v631 = vmul.f32 1.0, %v630
  %v632 = vmul.f32 %v631, 2.0
  %v633 = vsub.f32 %v632, 1.0
  %v634 = vmul.f32 %v631, %v498
  %636 = vrot.lane.b32.xlu0 %v633, 64
  %v637 = vpop.permute.xlu0 %636
  %v639 = vmul.f32 %v631, %v637
  %641 = vrot.lane.b32.xlu0 %v639, 32
  %v642 = vpop.permute.xlu0 %641
  %v644 = vadd.f32 %v634, %v642
  %v645 = vtanh.pop %v644
  %647 = vrot.lane.b32.xlu0 %v645, 64
  %v648 = vpop.permute.xlu0 %647
  %v650 = vmul.f32 %v631, %v648
  %v651 = vpack.c.bf16 %v577, %v577
  %653 = vrot.lane.b32.xlu0 %v651, 64
  %v654 = vpop.permute.xlu0 %653
  %v656 = vsel %vm190, %v581, %v654
  %v657 = vsel %vm364, %v656, 0
  %659 = vmatprep.subr.bf16.mxu0 0
  %660 = vmatpush1.bf16.msra.mxu0 %v356
  %661 = vmatprep.subr.bf16.mxu0 0
  %662 = vmatpush1.bf16.msra.mxu0 %v357
  %663 = vmatprep.subr.bf16.mxu0 0
  %664 = vmatpush1.bf16.msra.mxu0 %v358
  %665 = vmatprep.subr.bf16.mxu0 0
  %666 = vmatpush1.bf16.msra.mxu0 %v359
  %667 = vmatprep.subr.bf16.mxu0 0
  %668 = vmatpush1.bf16.msra.mxu0 0
  %669 = vmatprep.subr.bf16.mxu0 0
  %670 = vmatpush1.bf16.msra.mxu0 0
  %671 = vmatprep.subr.bf16.mxu0 0
  %672 = vmatpush1.bf16.msra.mxu0 0
  %673 = vmatprep.subr.bf16.mxu0 0
  %674 = vmatpush1.bf16.msra.mxu0 0
  %675 = vmatprep.subr.bf16.mxu0 0
  %676 = vmatpush1.bf16.msra.mxu0 0
  %677 = vmatprep.subr.bf16.mxu0 0
  %678 = vmatpush1.bf16.msra.mxu0 0
  %679 = vmatprep.subr.bf16.mxu0 0
  %680 = vmatpush1.bf16.msra.mxu0 0
  %681 = vmatprep.subr.bf16.mxu0 0
  %682 = vmatpush1.bf16.msra.mxu0 0
  %683 = vmatprep.subr.bf16.mxu0 0
  %684 = vmatpush1.bf16.msra.mxu0 0
  %685 = vmatprep.subr.bf16.mxu0 0
  %686 = vmatpush1.bf16.msra.mxu0 0
  %687 = vmatprep.subr.bf16.mxu0 0
  %688 = vmatpush1.bf16.msra.mxu0 0
  %689 = vmatprep.subr.bf16.mxu0 0
  %690 = vmatpush1.bf16.msra.mxu0 0
  %691 = vmatprep.mubr.bf16.mxu0 0
  %692 = vmatmul.mubr.bf16.gmra.mrb[0].mxu0 %v657
  %v693 = vpop.f32.mrb[0].mxu0
  %v694 = vadd.f32 %v338, %v693
  %v695 = vpop.f32.mrb[0].mxu0
  %v696 = vpop.f32.mrb[0].mxu0
  %v697 = vpop.f32.mrb[0].mxu0
  %698 = vdwg.mxu0
  %v699 = vxor.u32 %v694, 2147483648
  %v700 = vmul.f32 %v699, 1.442695
  %v701 = vpow.pop %v700
  %v702 = vadd.f32 %v701, 1.0
  %v703 = vrcp.pop %v702
  %v704 = vmul.f32 1.0, %v703
  %v705 = vmul.f32 %v704, 2.0
  %v706 = vsub.f32 %v705, 1.0
  %v707 = vmul.f32 %v704, %v571
  %709 = vrot.lane.b32.xlu0 %v706, 64
  %v710 = vpop.permute.xlu0 %709
  %v712 = vmul.f32 %v704, %v710
  %714 = vrot.lane.b32.xlu0 %v712, 32
  %v715 = vpop.permute.xlu0 %714
  %v717 = vadd.f32 %v707, %v715
  %v718 = vtanh.pop %v717
  %720 = vrot.lane.b32.xlu0 %v718, 64
  %v721 = vpop.permute.xlu0 %720
  %v723 = vmul.f32 %v704, %v721
  %v724 = vpack.c.bf16 %v650, %v650
  %726 = vrot.lane.b32.xlu0 %v724, 32
  %v727 = vpop.permute.xlu0 %726
  %v729 = vsel %vm190, %v727, 0
  %731 = vmatprep.subr.bf16.mxu0 0
  %732 = vmatpush1.bf16.msra.mxu0 %v186
  %733 = vmatprep.subr.bf16.mxu0 0
  %734 = vmatpush1.bf16.msra.mxu0 %v187
  %735 = vmatprep.subr.bf16.mxu0 0
  %736 = vmatpush1.bf16.msra.mxu0 0
  %737 = vmatprep.subr.bf16.mxu0 0
  %738 = vmatpush1.bf16.msra.mxu0 0
  %739 = vmatprep.subr.bf16.mxu0 0
  %740 = vmatpush1.bf16.msra.mxu0 0
  %741 = vmatprep.subr.bf16.mxu0 0
  %742 = vmatpush1.bf16.msra.mxu0 0
  %743 = vmatprep.subr.bf16.mxu0 0
  %744 = vmatpush1.bf16.msra.mxu0 0
  %745 = vmatprep.subr.bf16.mxu0 0
  %746 = vmatpush1.bf16.msra.mxu0 0
  %747 = vmatprep.subr.bf16.mxu0 0
  %748 = vmatpush1.bf16.msra.mxu0 0
  %749 = vmatprep.subr.bf16.mxu0 0
  %750 = vmatpush1.bf16.msra.mxu0 0
  %751 = vmatprep.subr.bf16.mxu0 0
  %752 = vmatpush1.bf16.msra.mxu0 0
  %753 = vmatprep.subr.bf16.mxu0 0
  %754 = vmatpush1.bf16.msra.mxu0 0
  %755 = vmatprep.subr.bf16.mxu0 0
  %756 = vmatpush1.bf16.msra.mxu0 0
  %757 = vmatprep.subr.bf16.mxu0 0
  %758 = vmatpush1.bf16.msra.mxu0 0
  %759 = vmatprep.subr.bf16.mxu0 0
  %760 = vmatpush1.bf16.msra.mxu0 0
  %761 = vmatprep.subr.bf16.mxu0 0
  %762 = vmatpush1.bf16.msra.mxu0 0
  %763 = vmatprep.mubr.bf16.mxu0 0
  %764 = vmatmul.mubr.bf16.gmra.mrb[0].mxu0 %v729
  %v765 = vpop.f32.mrb[0].mxu0
  %v766 = vadd.f32 0.0, %v765
  %v767 = vpop.f32.mrb[0].mxu0
  %v768 = vpop.f32.mrb[0].mxu0
  %v769 = vpop.f32.mrb[0].mxu0
  %770 = vdwg.mxu0
  %v771 = vadd.f32 %v151, %v766
  %v772 = vxor.u32 %v771, 2147483648
  %v773 = vmul.f32 %v772, 1.442695
  %v774 = vpow.pop %v773
  %v775 = vadd.f32 %v774, 1.0
  %v776 = vrcp.pop %v775
  %v777 = vmul.f32 1.0, %v776
  %v778 = vmul.f32 %v777, 2.0
  %v779 = vsub.f32 %v778, 1.0
  %v780 = vmul.f32 %v777, %v644
  %782 = vrot.lane.b32.xlu0 %v779, 64
  %v783 = vpop.permute.xlu0 %782
  %v785 = vmul.f32 %v777, %v783
  %787 = vrot.lane.b32.xlu0 %v785, 32
  %v788 = vpop.permute.xlu0 %787
  %v790 = vadd.f32 %v780, %v788
  %v791 = vtanh.pop %v790
  %793 = vrot.lane.b32.xlu0 %v791, 64
  %v794 = vpop.permute.xlu0 %793
  %v796 = vmul.f32 %v777, %v794
  %v797 = vpack.c.bf16 %v723, %v723
  %799 = vrot.lane.b32.xlu0 %v797, 64
  %v800 = vpop.permute.xlu0 %799
  %v802 = vsel %vm190, %v727, %v800
  %v803 = vsel %vm364, %v802, 0
  %805 = vmatprep.subr.bf16.mxu0 0
  %806 = vmatpush1.bf16.msra.mxu0 %v356
  %807 = vmatprep.subr.bf16.mxu0 0
  %808 = vmatpush1.bf16.msra.mxu0 %v357
  %809 = vmatprep.subr.bf16.mxu0 0
  %810 = vmatpush1.bf16.msra.mxu0 %v358
  %811 = vmatprep.subr.bf16.mxu0 0
  %812 = vmatpush1.bf16.msra.mxu0 %v359
  %813 = vmatprep.subr.bf16.mxu0 0
  %814 = vmatpush1.bf16.msra.mxu0 0
  %815 = vmatprep.subr.bf16.mxu0 0
  %816 = vmatpush1.bf16.msra.mxu0 0
  %817 = vmatprep.subr.bf16.mxu0 0
  %818 = vmatpush1.bf16.msra.mxu0 0
  %819 = vmatprep.subr.bf16.mxu0 0
  %820 = vmatpush1.bf16.msra.mxu0 0
  %821 = vmatprep.subr.bf16.mxu0 0
  %822 = vmatpush1.bf16.msra.mxu0 0
  %823 = vmatprep.subr.bf16.mxu0 0
  %824 = vmatpush1.bf16.msra.mxu0 0
  %825 = vmatprep.subr.bf16.mxu0 0
  %826 = vmatpush1.bf16.msra.mxu0 0
  %827 = vmatprep.subr.bf16.mxu0 0
  %828 = vmatpush1.bf16.msra.mxu0 0
  %829 = vmatprep.subr.bf16.mxu0 0
  %830 = vmatpush1.bf16.msra.mxu0 0
  %831 = vmatprep.subr.bf16.mxu0 0
  %832 = vmatpush1.bf16.msra.mxu0 0
  %833 = vmatprep.subr.bf16.mxu0 0
  %834 = vmatpush1.bf16.msra.mxu0 0
  %835 = vmatprep.subr.bf16.mxu0 0
  %836 = vmatpush1.bf16.msra.mxu0 0
  %837 = vmatprep.mubr.bf16.mxu0 0
  %838 = vmatmul.mubr.bf16.gmra.mrb[0].mxu0 %v803
  %v839 = vpop.f32.mrb[0].mxu0
  %v840 = vadd.f32 %v338, %v839
  %v841 = vpop.f32.mrb[0].mxu0
  %v842 = vpop.f32.mrb[0].mxu0
  %v843 = vpop.f32.mrb[0].mxu0
  %844 = vdwg.mxu0
  %v845 = vxor.u32 %v840, 2147483648
  %v846 = vmul.f32 %v845, 1.442695
  %v847 = vpow.pop %v846
  %v848 = vadd.f32 %v847, 1.0
  %v849 = vrcp.pop %v848
  %v850 = vmul.f32 1.0, %v849
  %v851 = vmul.f32 %v850, 2.0
  %v852 = vsub.f32 %v851, 1.0
  %v853 = vmul.f32 %v850, %v717
  %855 = vrot.lane.b32.xlu0 %v852, 64
  %v856 = vpop.permute.xlu0 %855
  %v858 = vmul.f32 %v850, %v856
  %860 = vrot.lane.b32.xlu0 %v858, 32
  %v861 = vpop.permute.xlu0 %860
  %v863 = vadd.f32 %v853, %v861
  %v864 = vtanh.pop %v863
  %866 = vrot.lane.b32.xlu0 %v864, 64
  %v867 = vpop.permute.xlu0 %866
  %v869 = vmul.f32 %v850, %v867
  %v870 = vpack.c.bf16 %v796, %v796
  %872 = vrot.lane.b32.xlu0 %v870, 32
  %v873 = vpop.permute.xlu0 %872
  %v875 = vsel %vm190, %v873, 0
  %877 = vmatprep.subr.bf16.mxu0 0
  %878 = vmatpush1.bf16.msra.mxu0 %v186
  %879 = vmatprep.subr.bf16.mxu0 0
  %880 = vmatpush1.bf16.msra.mxu0 %v187
  %881 = vmatprep.subr.bf16.mxu0 0
  %882 = vmatpush1.bf16.msra.mxu0 0
  %883 = vmatprep.subr.bf16.mxu0 0
  %884 = vmatpush1.bf16.msra.mxu0 0
  %885 = vmatprep.subr.bf16.mxu0 0
  %886 = vmatpush1.bf16.msra.mxu0 0
  %887 = vmatprep.subr.bf16.mxu0 0
  %888 = vmatpush1.bf16.msra.mxu0 0
  %889 = vmatprep.subr.bf16.mxu0 0
  %890 = vmatpush1.bf16.msra.mxu0 0
  %891 = vmatprep.subr.bf16.mxu0 0
  %892 = vmatpush1.bf16.msra.mxu0 0
  %893 = vmatprep.subr.bf16.mxu0 0
  %894 = vmatpush1.bf16.msra.mxu0 0
  %895 = vmatprep.subr.bf16.mxu0 0
  %896 = vmatpush1.bf16.msra.mxu0 0
  %897 = vmatprep.subr.bf16.mxu0 0
  %898 = vmatpush1.bf16.msra.mxu0 0
  %899 = vmatprep.subr.bf16.mxu0 0
  %900 = vmatpush1.bf16.msra.mxu0 0
  %901 = vmatprep.subr.bf16.mxu0 0
  %902 = vmatpush1.bf16.msra.mxu0 0
  %903 = vmatprep.subr.bf16.mxu0 0
  %904 = vmatpush1.bf16.msra.mxu0 0
  %905 = vmatprep.subr.bf16.mxu0 0
  %906 = vmatpush1.bf16.msra.mxu0 0
  %907 = vmatprep.subr.bf16.mxu0 0
  %908 = vmatpush1.bf16.msra.mxu0 0
  %909 = vmatprep.mubr.bf16.mxu0 0
  %910 = vmatmul.mubr.bf16.gmra.mrb[0].mxu0 %v875
  %v911 = vpop.f32.mrb[0].mxu0
  %v912 = vadd.f32 0.0, %v911
  %v913 = vpop.f32.mrb[0].mxu0
  %v914 = vpop.f32.mrb[0].mxu0
  %v915 = vpop.f32.mrb[0].mxu0
  %916 = vdwg.mxu0
  %v917 = vadd.f32 %v154, %v912
  %v918 = vxor.u32 %v917, 2147483648
  %v919 = vmul.f32 %v918, 1.442695
  %v920 = vpow.pop %v919
  %v921 = vadd.f32 %v920, 1.0
  %v922 = vrcp.pop %v921
  %v923 = vmul.f32 1.0, %v922
  %v924 = vmul.f32 %v923, 2.0
  %v925 = vsub.f32 %v924, 1.0
  %v926 = vmul.f32 %v923, %v790
  %928 = vrot.lane.b32.xlu0 %v925, 64
  %v929 = vpop.permute.xlu0 %928
  %v931 = vmul.f32 %v923, %v929
  %933 = vrot.lane.b32.xlu0 %v931, 32
  %v934 = vpop.permute.xlu0 %933
  %v936 = vadd.f32 %v926, %v934
  %v937 = vtanh.pop %v936
  %939 = vrot.lane.b32.xlu0 %v937, 64
  %v940 = vpop.permute.xlu0 %939
  %v942 = vmul.f32 %v923, %v940
  %v943 = vpack.c.bf16 %v869, %v869
  %945 = vrot.lane.b32.xlu0 %v943, 64
  %v946 = vpop.permute.xlu0 %945
  %v948 = vsel %vm190, %v873, %v946
  %v949 = vsel %vm364, %v948, 0
  %951 = vmatprep.subr.bf16.mxu0 0
  %952 = vmatpush1.bf16.msra.mxu0 %v356
  %953 = vmatprep.subr.bf16.mxu0 0
  %954 = vmatpush1.bf16.msra.mxu0 %v357
  %955 = vmatprep.subr.bf16.mxu0 0
  %956 = vmatpush1.bf16.msra.mxu0 %v358
  %957 = vmatprep.subr.bf16.mxu0 0
  %958 = vmatpush1.bf16.msra.mxu0 %v359
  %959 = vmatprep.subr.bf16.mxu0 0
  %960 = vmatpush1.bf16.msra.mxu0 0
  %961 = vmatprep.subr.bf16.mxu0 0
  %962 = vmatpush1.bf16.msra.mxu0 0
  %963 = vmatprep.subr.bf16.mxu0 0
  %964 = vmatpush1.bf16.msra.mxu0 0
  %965 = vmatprep.subr.bf16.mxu0 0
  %966 = vmatpush1.bf16.msra.mxu0 0
  %967 = vmatprep.subr.bf16.mxu0 0
  %968 = vmatpush1.bf16.msra.mxu0 0
  %969 = vmatprep.subr.bf16.mxu0 0
  %970 = vmatpush1.bf16.msra.mxu0 0
  %971 = vmatprep.subr.bf16.mxu0 0
  %972 = vmatpush1.bf16.msra.mxu0 0
  %973 = vmatprep.subr.bf16.mxu0 0
  %974 = vmatpush1.bf16.msra.mxu0 0
  %975 = vmatprep.subr.bf16.mxu0 0
  %976 = vmatpush1.bf16.msra.mxu0 0
  %977 = vmatprep.subr.bf16.mxu0 0
  %978 = vmatpush1.bf16.msra.mxu0 0
  %979 = vmatprep.subr.bf16.mxu0 0
  %980 = vmatpush1.bf16.msra.mxu0 0
  %981 = vmatprep.subr.bf16.mxu0 0
  %982 = vmatpush1.bf16.msra.mxu0 0
  %983 = vmatprep.mubr.bf16.mxu0 0
  %984 = vmatmul.mubr.bf16.gmra.mrb[0].mxu0 %v949
  %v985 = vpop.f32.mrb[0].mxu0
  %v986 = vadd.f32 %v338, %v985
  %v987 = vpop.f32.mrb[0].mxu0
  %v988 = vpop.f32.mrb[0].mxu0
  %v989 = vpop.f32.mrb[0].mxu0
  %990 = vdwg.mxu0
  %v991 = vxor.u32 %v986, 2147483648
  %v992 = vmul.f32 %v991, 1.442695
  %v993 = vpow.pop %v992
  %v994 = vadd.f32 %v993, 1.0
  %v995 = vrcp.pop %v994
  %v996 = vmul.f32 1.0, %v995
  %v997 = vmul.f32 %v996, 2.0
  %v998 = vsub.f32 %v997, 1.0
  %v999 = vmul.f32 %v996, %v863
  %1001 = vrot.lane.b32.xlu0 %v998, 64
  %v1002 = vpop.permute.xlu0 %1001
  %v1004 = vmul.f32 %v996, %v1002
  %1006 = vrot.lane.b32.xlu0 %v1004, 32
  %v1007 = vpop.permute.xlu0 %1006
  %v1009 = vadd.f32 %v999, %v1007
  %v1010 = vtanh.pop %v1009
  %1012 = vrot.lane.b32.xlu0 %v1010, 64
  %v1013 = vpop.permute.xlu0 %1012
  %v1015 = vmul.f32 %v996, %v1013
  %v1016 = vpack.c.bf16 %v942, %v942
  %1018 = vrot.lane.b32.xlu0 %v1016, 32
  %v1019 = vpop.permute.xlu0 %1018
  %v1021 = vsel %vm190, %v1019, 0
  %1023 = vmatprep.subr.bf16.mxu0 0
  %1024 = vmatpush1.bf16.msra.mxu0 %v186
  %1025 = vmatprep.subr.bf16.mxu0 0
  %1026 = vmatpush1.bf16.msra.mxu0 %v187
  %1027 = vmatprep.subr.bf16.mxu0 0
  %1028 = vmatpush1.bf16.msra.mxu0 0
  %1029 = vmatprep.subr.bf16.mxu0 0
  %1030 = vmatpush1.bf16.msra.mxu0 0
  %1031 = vmatprep.subr.bf16.mxu0 0
  %1032 = vmatpush1.bf16.msra.mxu0 0
  %1033 = vmatprep.subr.bf16.mxu0 0
  %1034 = vmatpush1.bf16.msra.mxu0 0
  %1035 = vmatprep.subr.bf16.mxu0 0
  %1036 = vmatpush1.bf16.msra.mxu0 0
  %1037 = vmatprep.subr.bf16.mxu0 0
  %1038 = vmatpush1.bf16.msra.mxu0 0
  %1039 = vmatprep.subr.bf16.mxu0 0
  %1040 = vmatpush1.bf16.msra.mxu0 0
  %1041 = vmatprep.subr.bf16.mxu0 0
  %1042 = vmatpush1.bf16.msra.mxu0 0
  %1043 = vmatprep.subr.bf16.mxu0 0
  %1044 = vmatpush1.bf16.msra.mxu0 0
  %1045 = vmatprep.subr.bf16.mxu0 0
  %1046 = vmatpush1.bf16.msra.mxu0 0
  %1047 = vmatprep.subr.bf16.mxu0 0
  %1048 = vmatpush1.bf16.msra.mxu0 0
  %1049 = vmatprep.subr.bf16.mxu0 0
  %1050 = vmatpush1.bf16.msra.mxu0 0
  %1051 = vmatprep.subr.bf16.mxu0 0
  %1052 = vmatpush1.bf16.msra.mxu0 0
  %1053 = vmatprep.subr.bf16.mxu0 0
  %1054 = vmatpush1.bf16.msra.mxu0 0
  %1055 = vmatprep.mubr.bf16.mxu0 0
  %1056 = vmatmul.mubr.bf16.gmra.mrb[0].mxu0 %v1021
  %v1057 = vpop.f32.mrb[0].mxu0
  %v1058 = vadd.f32 0.0, %v1057
  %v1059 = vpop.f32.mrb[0].mxu0
  %v1060 = vpop.f32.mrb[0].mxu0
  %v1061 = vpop.f32.mrb[0].mxu0
  %1062 = vdwg.mxu0
  %v1063 = vadd.f32 %v159, %v1058
  %v1064 = vxor.u32 %v1063, 2147483648
  %v1065 = vmul.f32 %v1064, 1.442695
  %v1066 = vpow.pop %v1065
  %v1067 = vadd.f32 %v1066, 1.0
  %v1068 = vrcp.pop %v1067
  %v1069 = vmul.f32 1.0, %v1068
  %v1070 = vmul.f32 %v1069, 2.0
  %v1071 = vsub.f32 %v1070, 1.0
  %v1072 = vmul.f32 %v1069, %v936
  %1074 = vrot.lane.b32.xlu0 %v1071, 64
  %v1075 = vpop.permute.xlu0 %1074
  %v1077 = vmul.f32 %v1069, %v1075
  %1079 = vrot.lane.b32.xlu0 %v1077, 32
  %v1080 = vpop.permute.xlu0 %1079
  %v1082 = vadd.f32 %v1072, %v1080
  %v1083 = vtanh.pop %v1082
  %1085 = vrot.lane.b32.xlu0 %v1083, 64
  %v1086 = vpop.permute.xlu0 %1085
  %v1088 = vmul.f32 %v1069, %v1086
  %v1089 = vpack.c.bf16 %v1015, %v1015
  %1091 = vrot.lane.b32.xlu0 %v1089, 64
  %v1092 = vpop.permute.xlu0 %1091
  %v1094 = vsel %vm190, %v1019, %v1092
  %v1095 = vsel %vm364, %v1094, 0
  %1097 = vmatprep.subr.bf16.mxu0 0
  %1098 = vmatpush1.bf16.msra.mxu0 %v356
  %1099 = vmatprep.subr.bf16.mxu0 0
  %1100 = vmatpush1.bf16.msra.mxu0 %v357
  %1101 = vmatprep.subr.bf16.mxu0 0
  %1102 = vmatpush1.bf16.msra.mxu0 %v358
  %1103 = vmatprep.subr.bf16.mxu0 0
  %1104 = vmatpush1.bf16.msra.mxu0 %v359
  %1105 = vmatprep.subr.bf16.mxu0 0
  %1106 = vmatpush1.bf16.msra.mxu0 0
  %1107 = vmatprep.subr.bf16.mxu0 0
  %1108 = vmatpush1.bf16.msra.mxu0 0
  %1109 = vmatprep.subr.bf16.mxu0 0
  %1110 = vmatpush1.bf16.msra.mxu0 0
  %1111 = vmatprep.subr.bf16.mxu0 0
  %1112 = vmatpush1.bf16.msra.mxu0 0
  %1113 = vmatprep.subr.bf16.mxu0 0
  %1114 = vmatpush1.bf16.msra.mxu0 0
  %1115 = vmatprep.subr.bf16.mxu0 0
  %1116 = vmatpush1.bf16.msra.mxu0 0
  %1117 = vmatprep.subr.bf16.mxu0 0
  %1118 = vmatpush1.bf16.msra.mxu0 0
  %1119 = vmatprep.subr.bf16.mxu0 0
  %1120 = vmatpush1.bf16.msra.mxu0 0
  %1121 = vmatprep.subr.bf16.mxu0 0
  %1122 = vmatpush1.bf16.msra.mxu0 0
  %1123 = vmatprep.subr.bf16.mxu0 0
  %1124 = vmatpush1.bf16.msra.mxu0 0
  %1125 = vmatprep.subr.bf16.mxu0 0
  %1126 = vmatpush1.bf16.msra.mxu0 0
  %1127 = vmatprep.subr.bf16.mxu0 0
  %1128 = vmatpush1.bf16.msra.mxu0 0
  %1129 = vmatprep.mubr.bf16.mxu0 0
  %1130 = vmatmul.mubr.bf16.gmra.mrb[0].mxu0 %v1095
  %v1131 = vpop.f32.mrb[0].mxu0
  %v1132 = vadd.f32 %v338, %v1131
  %v1133 = vpop.f32.mrb[0].mxu0
  %v1134 = vpop.f32.mrb[0].mxu0
  %v1135 = vpop.f32.mrb[0].mxu0
  %1136 = vdwg.mxu0
  %v1137 = vxor.u32 %v1132, 2147483648
  %v1138 = vmul.f32 %v1137, 1.442695
  %v1139 = vpow.pop %v1138
  %v1140 = vadd.f32 %v1139, 1.0
  %v1141 = vrcp.pop %v1140
  %v1142 = vmul.f32 1.0, %v1141
  %v1143 = vmul.f32 %v1142, 2.0
  %v1144 = vsub.f32 %v1143, 1.0
  %v1145 = vmul.f32 %v1142, %v1009
  %1147 = vrot.lane.b32.xlu0 %v1144, 64
  %v1148 = vpop.permute.xlu0 %1147
  %v1150 = vmul.f32 %v1142, %v1148
  %1152 = vrot.lane.b32.xlu0 %v1150, 32
  %v1153 = vpop.permute.xlu0 %1152
  %v1155 = vadd.f32 %v1145, %v1153
  %v1156 = vtanh.pop %v1155
  %1158 = vrot.lane.b32.xlu0 %v1156, 64
  %v1159 = vpop.permute.xlu0 %1158
  %v1161 = vmul.f32 %v1142, %v1159
  %v1162 = vpack.c.bf16 %v1088, %v1088
  %1164 = vrot.lane.b32.xlu0 %v1162, 32
  %v1165 = vpop.permute.xlu0 %1164
  %v1167 = vsel %vm190, %v1165, 0
  %1169 = vmatprep.subr.bf16.mxu0 0
  %1170 = vmatpush1.bf16.msra.mxu0 %v186
  %1171 = vmatprep.subr.bf16.mxu0 0
  %1172 = vmatpush1.bf16.msra.mxu0 %v187
  %1173 = vmatprep.subr.bf16.mxu0 0
  %1174 = vmatpush1.bf16.msra.mxu0 0
  %1175 = vmatprep.subr.bf16.mxu0 0
  %1176 = vmatpush1.bf16.msra.mxu0 0
  %1177 = vmatprep.subr.bf16.mxu0 0
  %1178 = vmatpush1.bf16.msra.mxu0 0
  %1179 = vmatprep.subr.bf16.mxu0 0
  %1180 = vmatpush1.bf16.msra.mxu0 0
  %1181 = vmatprep.subr.bf16.mxu0 0
  %1182 = vmatpush1.bf16.msra.mxu0 0
  %1183 = vmatprep.subr.bf16.mxu0 0
  %1184 = vmatpush1.bf16.msra.mxu0 0
  %1185 = vmatprep.subr.bf16.mxu0 0
  %1186 = vmatpush1.bf16.msra.mxu0 0
  %1187 = vmatprep.subr.bf16.mxu0 0
  %1188 = vmatpush1.bf16.msra.mxu0 0
  %1189 = vmatprep.subr.bf16.mxu0 0
  %1190 = vmatpush1.bf16.msra.mxu0 0
  %1191 = vmatprep.subr.bf16.mxu0 0
  %1192 = vmatpush1.bf16.msra.mxu0 0
  %1193 = vmatprep.subr.bf16.mxu0 0
  %1194 = vmatpush1.bf16.msra.mxu0 0
  %1195 = vmatprep.subr.bf16.mxu0 0
  %1196 = vmatpush1.bf16.msra.mxu0 0
  %1197 = vmatprep.subr.bf16.mxu0 0
  %1198 = vmatpush1.bf16.msra.mxu0 0
  %1199 = vmatprep.subr.bf16.mxu0 0
  %1200 = vmatpush1.bf16.msra.mxu0 0
  %1201 = vmatprep.mubr.bf16.mxu0 0
  %1202 = vmatmul.mubr.bf16.gmra.mrb[0].mxu0 %v1167
  %v1203 = vpop.f32.mrb[0].mxu0
  %v1204 = vadd.f32 0.0, %v1203
  %v1205 = vpop.f32.mrb[0].mxu0
  %v1206 = vpop.f32.mrb[0].mxu0
  %v1207 = vpop.f32.mrb[0].mxu0
  %1208 = vdwg.mxu0
  %v1209 = vadd.f32 %v162, %v1204
  %v1210 = vxor.u32 %v1209, 2147483648
  %v1211 = vmul.f32 %v1210, 1.442695
  %v1212 = vpow.pop %v1211
  %v1213 = vadd.f32 %v1212, 1.0
  %v1214 = vrcp.pop %v1213
  %v1215 = vmul.f32 1.0, %v1214
  %v1216 = vmul.f32 %v1215, 2.0
  %v1217 = vsub.f32 %v1216, 1.0
  %v1218 = vmul.f32 %v1215, %v1082
  %1220 = vrot.lane.b32.xlu0 %v1217, 64
  %v1221 = vpop.permute.xlu0 %1220
  %v1223 = vmul.f32 %v1215, %v1221
  %1225 = vrot.lane.b32.xlu0 %v1223, 32
  %v1226 = vpop.permute.xlu0 %1225
  %v1228 = vadd.f32 %v1218, %v1226
  %v1229 = vtanh.pop %v1228
  %1231 = vrot.lane.b32.xlu0 %v1229, 64
  %v1232 = vpop.permute.xlu0 %1231
  %v1234 = vmul.f32 %v1215, %v1232
  %v1235 = vpack.c.bf16 %v1161, %v1161
  %1237 = vrot.lane.b32.xlu0 %v1235, 64
  %v1238 = vpop.permute.xlu0 %1237
  %v1240 = vsel %vm190, %v1165, %v1238
  %v1241 = vsel %vm364, %v1240, 0
  %1243 = vmatprep.subr.bf16.mxu0 0
  %1244 = vmatpush1.bf16.msra.mxu0 %v356
  %1245 = vmatprep.subr.bf16.mxu0 0
  %1246 = vmatpush1.bf16.msra.mxu0 %v357
  %1247 = vmatprep.subr.bf16.mxu0 0
  %1248 = vmatpush1.bf16.msra.mxu0 %v358
  %1249 = vmatprep.subr.bf16.mxu0 0
  %1250 = vmatpush1.bf16.msra.mxu0 %v359
  %1251 = vmatprep.subr.bf16.mxu0 0
  %1252 = vmatpush1.bf16.msra.mxu0 0
  %1253 = vmatprep.subr.bf16.mxu0 0
  %1254 = vmatpush1.bf16.msra.mxu0 0
  %1255 = vmatprep.subr.bf16.mxu0 0
  %1256 = vmatpush1.bf16.msra.mxu0 0
  %1257 = vmatprep.subr.bf16.mxu0 0
  %1258 = vmatpush1.bf16.msra.mxu0 0
  %1259 = vmatprep.subr.bf16.mxu0 0
  %1260 = vmatpush1.bf16.msra.mxu0 0
  %1261 = vmatprep.subr.bf16.mxu0 0
  %1262 = vmatpush1.bf16.msra.mxu0 0
  %1263 = vmatprep.subr.bf16.mxu0 0
  %1264 = vmatpush1.bf16.msra.mxu0 0
  %1265 = vmatprep.subr.bf16.mxu0 0
  %1266 = vmatpush1.bf16.msra.mxu0 0
  %1267 = vmatprep.subr.bf16.mxu0 0
  %1268 = vmatpush1.bf16.msra.mxu0 0
  %1269 = vmatprep.subr.bf16.mxu0 0
  %1270 = vmatpush1.bf16.msra.mxu0 0
  %1271 = vmatprep.subr.bf16.mxu0 0
  %1272 = vmatpush1.bf16.msra.mxu0 0
  %1273 = vmatprep.subr.bf16.mxu0 0
  %1274 = vmatpush1.bf16.msra.mxu0 0
  %1275 = vmatprep.mubr.bf16.mxu0 0
  %1276 = vmatmul.mubr.bf16.gmra.mrb[0].mxu0 %v1241
  %v1277 = vpop.f32.mrb[0].mxu0
  %v1278 = vadd.f32 %v338, %v1277
  %v1279 = vpop.f32.mrb[0].mxu0
  %v1280 = vpop.f32.mrb[0].mxu0
  %v1281 = vpop.f32.mrb[0].mxu0
  %1282 = vdwg.mxu0
  %v1283 = vxor.u32 %v1278, 2147483648
  %v1284 = vmul.f32 %v1283, 1.442695
  %v1285 = vpow.pop %v1284
  %v1286 = vadd.f32 %v1285, 1.0
  %v1287 = vrcp.pop %v1286
  %v1288 = vmul.f32 1.0, %v1287
  %v1289 = vmul.f32 %v1288, 2.0
  %v1290 = vsub.f32 %v1289, 1.0
  %v1291 = vmul.f32 %v1288, %v1155
  %1293 = vrot.lane.b32.xlu0 %v1290, 64
  %v1294 = vpop.permute.xlu0 %1293
  %v1296 = vmul.f32 %v1288, %v1294
  %1298 = vrot.lane.b32.xlu0 %v1296, 32
  %v1299 = vpop.permute.xlu0 %1298
  %v1301 = vadd.f32 %v1291, %v1299
  %v1302 = vtanh.pop %v1301
  %1304 = vrot.lane.b32.xlu0 %v1302, 64
  %v1305 = vpop.permute.xlu0 %1304
  %v1307 = vmul.f32 %v1288, %v1305
  %v1308 = vpack.c.bf16 %v1234, %v1234
  %v1309 = vpack.c.bf16 %v1307, %v1307
  %1311 = vrot.lane.b32.xlu0 %v1308, 32
  %v1312 = vpop.permute.xlu0 %1311
  %1314 = vrot.lane.b32.xlu0 %v1309, 64
  %v1315 = vpop.permute.xlu0 %1314
  %v1318 = vsel %vm190, %v1312, %v1315
  %v1319 = vsel %vm364, %v1318, 0
  %1321 = vmatprep.subr.bf16.mxu0 0
  %1322 = vmatpush1.bf16.msra.mxu0 %v356
  %1323 = vmatprep.subr.bf16.mxu0 0
  %1324 = vmatpush1.bf16.msra.mxu0 %v357
  %1325 = vmatprep.subr.bf16.mxu0 0
  %1326 = vmatpush1.bf16.msra.mxu0 %v358
  %1327 = vmatprep.subr.bf16.mxu0 0
  %1328 = vmatpush1.bf16.msra.mxu0 %v359
  %1329 = vmatprep.subr.bf16.mxu0 0
  %1330 = vmatpush1.bf16.msra.mxu0 0
  %1331 = vmatprep.subr.bf16.mxu0 0
  %1332 = vmatpush1.bf16.msra.mxu0 0
  %1333 = vmatprep.subr.bf16.mxu0 0
  %1334 = vmatpush1.bf16.msra.mxu0 0
  %1335 = vmatprep.subr.bf16.mxu0 0
  %1336 = vmatpush1.bf16.msra.mxu0 0
  %1337 = vmatprep.subr.bf16.mxu0 0
  %1338 = vmatpush1.bf16.msra.mxu0 0
  %1339 = vmatprep.subr.bf16.mxu0 0
  %1340 = vmatpush1.bf16.msra.mxu0 0
  %1341 = vmatprep.subr.bf16.mxu0 0
  %1342 = vmatpush1.bf16.msra.mxu0 0
  %1343 = vmatprep.subr.bf16.mxu0 0
  %1344 = vmatpush1.bf16.msra.mxu0 0
  %1345 = vmatprep.subr.bf16.mxu0 0
  %1346 = vmatpush1.bf16.msra.mxu0 0
  %1347 = vmatprep.subr.bf16.mxu0 0
  %1348 = vmatpush1.bf16.msra.mxu0 0
  %1349 = vmatprep.subr.bf16.mxu0 0
  %1350 = vmatpush1.bf16.msra.mxu0 0
  %1351 = vmatprep.subr.bf16.mxu0 0
  %1352 = vmatpush1.bf16.msra.mxu0 0
  %1353 = vmatprep.mubr.bf16.mxu0 0
  %1354 = vmatmul.mubr.bf16.gmra.mrb[0].mxu0 %v1319
  %v1355 = vpop.f32.mrb[0].mxu0
  %v1356 = vadd.f32 %v338, %v1355
  %v1357 = vpop.f32.mrb[0].mxu0
  %v1358 = vpop.f32.mrb[0].mxu0
  %v1359 = vpop.f32.mrb[0].mxu0
  %1360 = vdwg.mxu0
  %v1361 = vxor.u32 %v1356, 2147483648
  %v1362 = vmul.f32 %v1361, 1.442695
  %v1363 = vpow.pop %v1362
  %v1364 = vadd.f32 %v1363, 1.0
  %v1365 = vrcp.pop %v1364
  %v1366 = vmul.f32 1.0, %v1365
  %v1367 = vmul.f32 %v1366, 2.0
  %v1368 = vsub.f32 %v1367, 1.0
  %v1369 = vmul.f32 %v1366, %v1301
  %1371 = vrot.lane.b32.xlu0 %v1368, 64
  %v1372 = vpop.permute.xlu0 %1371
  %v1374 = vmul.f32 %v1366, %v1372
  %1376 = vrot.lane.b32.xlu0 %v1374, 32
  %v1377 = vpop.permute.xlu0 %1376
  %v1379 = vadd.f32 %v1369, %v1377
  %v1380 = vtanh.pop %v1379
  %1382 = vrot.lane.b32.xlu0 %v1380, 64
  %v1383 = vpop.permute.xlu0 %1382
  %v1385 = vmul.f32 %v1366, %v1383
  %v1386 = vpack.c.bf16 %v1385, %v1385
  %v1387 = vld [vmem:[%s6] sm:$0xf]
  %v1388 = vld [vmem:[%s6 + $0x4] sm:$0xf]
  %v1389 = vld [vmem:[%s6 + $0x8] sm:$0xf]
  %v1390 = vld [vmem:[%s6 + $0xc] sm:$0xf]
  %v1391 = vld [vmem:[%s7] sm:$0x1]
  %v1393 = vlaneseq
  %v1394 = vshrl.u32 %v1393, 7
  %v1395 = vsub.s32 0, %v1394
  %v1396 = vrot.slane %v1391, %v1395
  %1399 = vrot.lane.b32.xlu0 %v1386, 32
  %v1400 = vpop.permute.xlu0 %1399
  %v1405 = vunpack.c.l.b16 %v1387
  %v1406 = vunpack.c.l.b16 %v1388
  %v1407 = vunpack.c.l.b16 %v1389
  %v1408 = vunpack.c.l.b16 %v1390
  %v1409 = vpack.c.b16 %v1406, %v1405
  %v1410 = vpack.c.b16 %v1408, %v1407
  %v1414 = vsel %vm190, %v1400, 0
  %1416 = vmatprep.subr.bf16.mxu0 0
  %1417 = vmatpush1.bf16.msra.mxu0 %v1409
  %1418 = vmatprep.subr.bf16.mxu0 0
  %1419 = vmatpush1.bf16.msra.mxu0 %v1410
  %1420 = vmatprep.subr.bf16.mxu0 0
  %1421 = vmatpush1.bf16.msra.mxu0 0
  %1422 = vmatprep.subr.bf16.mxu0 0
  %1423 = vmatpush1.bf16.msra.mxu0 0
  %1424 = vmatprep.subr.bf16.mxu0 0
  %1425 = vmatpush1.bf16.msra.mxu0 0
  %1426 = vmatprep.subr.bf16.mxu0 0
  %1427 = vmatpush1.bf16.msra.mxu0 0
  %1428 = vmatprep.subr.bf16.mxu0 0
  %1429 = vmatpush1.bf16.msra.mxu0 0
  %1430 = vmatprep.subr.bf16.mxu0 0
  %1431 = vmatpush1.bf16.msra.mxu0 0
  %1432 = vmatprep.subr.bf16.mxu0 0
  %1433 = vmatpush1.bf16.msra.mxu0 0
  %1434 = vmatprep.subr.bf16.mxu0 0
  %1435 = vmatpush1.bf16.msra.mxu0 0
  %1436 = vmatprep.subr.bf16.mxu0 0
  %1437 = vmatpush1.bf16.msra.mxu0 0
  %1438 = vmatprep.subr.bf16.mxu0 0
  %1439 = vmatpush1.bf16.msra.mxu0 0
  %1440 = vmatprep.subr.bf16.mxu0 0
  %1441 = vmatpush1.bf16.msra.mxu0 0
  %1442 = vmatprep.subr.bf16.mxu0 0
  %1443 = vmatpush1.bf16.msra.mxu0 0
  %1444 = vmatprep.subr.bf16.mxu0 0
  %1445 = vmatpush1.bf16.msra.mxu0 0
  %1446 = vmatprep.subr.bf16.mxu0 0
  %1447 = vmatpush1.bf16.msra.mxu0 0
  %1448 = vmatprep.mubr.bf16.mxu0 0
  %1449 = vmatmul.mubr.bf16.gmra.mrb[0].mxu0 %v1414
  %v1450 = vpop.f32.mrb[0].mxu0
  %v1451 = vadd.f32 %v1396, %v1450
  %v1452 = vpop.f32.mrb[0].mxu0
  %v1453 = vpop.f32.mrb[0].mxu0
  %v1454 = vpop.f32.mrb[0].mxu0
  %1455 = vdwg.mxu0
  %v1456 = vmax.f32 %v1451, 0.0
  %v1457 = vpack.c.bf16 %v1456, %v1456
  %v1458 = vld [vmem:[%s8] sm:$0xf]
  %v1459 = vld [vmem:[%s8 + $0x4] sm:$0xf]
  %v1460 = vld [vmem:[%s8 + $0x8] sm:$0xf]
  %v1461 = vld [vmem:[%s8 + $0xc] sm:$0xf]
  %v1462 = vld [vmem:[%s9] sm:$0x1]
  %v1464 = vlaneseq
  %v1465 = vshrl.u32 %v1464, 7
  %v1466 = vsub.s32 0, %v1465
  %v1467 = vrot.slane %v1462, %v1466
  %v1473 = vunpack.c.l.b16 %v1458
  %v1474 = vunpack.c.l.b16 %v1459
  %v1475 = vunpack.c.l.b16 %v1460
  %v1476 = vunpack.c.l.b16 %v1461
  %v1477 = vpack.c.b16 %v1474, %v1473
  %v1478 = vpack.c.b16 %v1476, %v1475
  %v1482 = vsel %vm190, %v1457, 0
  %1484 = vmatprep.subr.bf16.mxu0 0
  %1485 = vmatpush1.bf16.msra.mxu0 %v1477
  %1486 = vmatprep.subr.bf16.mxu0 0
  %1487 = vmatpush1.bf16.msra.mxu0 %v1478
  %1488 = vmatprep.subr.bf16.mxu0 0
  %1489 = vmatpush1.bf16.msra.mxu0 0
  %1490 = vmatprep.subr.bf16.mxu0 0
  %1491 = vmatpush1.bf16.msra.mxu0 0
  %1492 = vmatprep.subr.bf16.mxu0 0
  %1493 = vmatpush1.bf16.msra.mxu0 0
  %1494 = vmatprep.subr.bf16.mxu0 0
  %1495 = vmatpush1.bf16.msra.mxu0 0
  %1496 = vmatprep.subr.bf16.mxu0 0
  %1497 = vmatpush1.bf16.msra.mxu0 0
  %1498 = vmatprep.subr.bf16.mxu0 0
  %1499 = vmatpush1.bf16.msra.mxu0 0
  %1500 = vmatprep.subr.bf16.mxu0 0
  %1501 = vmatpush1.bf16.msra.mxu0 0
  %1502 = vmatprep.subr.bf16.mxu0 0
  %1503 = vmatpush1.bf16.msra.mxu0 0
  %1504 = vmatprep.subr.bf16.mxu0 0
  %1505 = vmatpush1.bf16.msra.mxu0 0
  %1506 = vmatprep.subr.bf16.mxu0 0
  %1507 = vmatpush1.bf16.msra.mxu0 0
  %1508 = vmatprep.subr.bf16.mxu0 0
  %1509 = vmatpush1.bf16.msra.mxu0 0
  %1510 = vmatprep.subr.bf16.mxu0 0
  %1511 = vmatpush1.bf16.msra.mxu0 0
  %1512 = vmatprep.subr.bf16.mxu0 0
  %1513 = vmatpush1.bf16.msra.mxu0 0
  %1514 = vmatprep.subr.bf16.mxu0 0
  %1515 = vmatpush1.bf16.msra.mxu0 0
  %1516 = vmatprep.mubr.bf16.mxu0 0
  %1517 = vmatmul.mubr.bf16.gmra.mrb[0].mxu0 %v1482
  %v1518 = vpop.f32.mrb[0].mxu0
  %v1519 = vadd.f32 %v1467, %v1518
  %v1520 = vpop.f32.mrb[0].mxu0
  %v1521 = vpop.f32.mrb[0].mxu0
  %v1522 = vpop.f32.mrb[0].mxu0
  %1523 = vdwg.mxu0
  %v1524 = vmax.f32 %v1519, 0.0
  %v1525 = vpack.c.bf16 %v1524, %v1524
  %v1526 = vld [vmem:[%s10] sm:$0xf]
  %v1527 = vld [vmem:[%s10 + $0x4] sm:$0xf]
  %v1528 = vld [vmem:[#allocation2] sm:$0x1]
  %v1530 = vlaneseq
  %v1531 = vshrl.u32 %v1530, 7
  %v1532 = vsub.s32 0, %v1531
  %v1533 = vrot.slane %v1528, %v1532
  %v1537 = vunpack.c.l.b16 %v1526
  %v1538 = vunpack.c.l.b16 %v1527
  %v1539 = vpack.c.b16 %v1538, %v1537
  %v1542 = vsel %vm87, %v1525, 0
  %1544 = vmatprep.subr.bf16.mxu0 0
  %1545 = vmatpush1.bf16.msra.mxu0 %v1539
  %1546 = vmatprep.subr.bf16.mxu0 0
  %1547 = vmatpush1.bf16.msra.mxu0 0
  %1548 = vmatprep.subr.bf16.mxu0 0
  %1549 = vmatpush1.bf16.msra.mxu0 0
  %1550 = vmatprep.subr.bf16.mxu0 0
  %1551 = vmatpush1.bf16.msra.mxu0 0
  %1552 = vmatprep.subr.bf16.mxu0 0
  %1553 = vmatpush1.bf16.msra.mxu0 0
  %1554 = vmatprep.subr.bf16.mxu0 0
  %1555 = vmatpush1.bf16.msra.mxu0 0
  %1556 = vmatprep.subr.bf16.mxu0 0
  %1557 = vmatpush1.bf16.msra.mxu0 0
  %1558 = vmatprep.subr.bf16.mxu0 0
  %1559 = vmatpush1.bf16.msra.mxu0 0
  %1560 = vmatprep.subr.bf16.mxu0 0
  %1561 = vmatpush1.bf16.msra.mxu0 0
  %1562 = vmatprep.subr.bf16.mxu0 0
  %1563 = vmatpush1.bf16.msra.mxu0 0
  %1564 = vmatprep.subr.bf16.mxu0 0
  %1565 = vmatpush1.bf16.msra.mxu0 0
  %1566 = vmatprep.subr.bf16.mxu0 0
  %1567 = vmatpush1.bf16.msra.mxu0 0
  %1568 = vmatprep.subr.bf16.mxu0 0
  %1569 = vmatpush1.bf16.msra.mxu0 0
  %1570 = vmatprep.subr.bf16.mxu0 0
  %1571 = vmatpush1.bf16.msra.mxu0 0
  %1572 = vmatprep.subr.bf16.mxu0 0
  %1573 = vmatpush1.bf16.msra.mxu0 0
  %1574 = vmatprep.subr.bf16.mxu0 0
  %1575 = vmatpush1.bf16.msra.mxu0 0
  %1576 = vmatprep.mubr.bf16.mxu0 0
  %1577 = vmatmul.mubr.bf16.gmra.mrb[0].mxu0 %v1542
  %v1578 = vpop.f32.mrb[0].mxu0
  %v1579 = vadd.f32 %v1533, %v1578
  %v1580 = vpop.f32.mrb[0].mxu0
  %v1581 = vpop.f32.mrb[0].mxu0
  %v1582 = vpop.f32.mrb[0].mxu0
  %1583 = vdwg.mxu0
  %v1584 = vxor.u32 %v1579, 2147483648
  %v1585 = vmul.f32 %v1584, 1.442695
  %v1586 = vpow.pop %v1585
  %v1587 = vadd.f32 %v1586, 1.0
  %v1588 = vrcp.pop %v1587
  %v1589 = vmul.f32 1.0, %v1588
  %vm1590 = vcmask 7168
  %1591 = vst.msk [vmem:[%s12] sm:$0xff] %vm1590, %v1589
  // Predicated region
  $region50: #{lstm_forward.1} parent=0 // pred_check
    _
  $region51: #{lstm_forward.1} parent=0 // pred_check_branch
    %1593 = sbr.rel (0) target = $region53
  $region52: #{lstm_forward.1} parent=0 // pred_region
    _
  $region53: #{lstm_forward.1} parent=0 // pred_fallthru
    _
  // Predicated region
  $region54: #{lstm_forward.1} parent=0 // pred_check
    _
  $region55: #{lstm_forward.1} parent=0 // pred_check_branch
    %1595 = sbr.rel (0) target = $region57
  $region56: #{lstm_forward.1} parent=0 // pred_region
    _
  $region57: #{lstm_forward.1} parent=0 // pred_fallthru
    _

</llo_original>
